<compile_context>
chip_gen: v6e
topology: v6e:2x2x1
jax: 0.10.0
libtpu: 0.0.40
codegen_flags: <defaults>
</compile_context>

<pallas_src>
import functools

import numpy as np
import jax
import jax.numpy as jnp
from jax.experimental import pallas as pl
from jax.experimental.pallas import tpu as pltpu


def _round_up(a, m):
    return (a + m - 1) // m * m


def _vmem_cap_bytes():
    try:
        return int(pltpu.get_tpu_info().vmem_capacity_bytes)
    except Exception:
        return 64 << 20   # conservative fallback (v7x-sized)


# ----------------------------------------------------------------------------
# Pallas kernel: M-tiled GEMM, full-K-resident weight, fused bias epilogue.
#   grid = (cdiv(M, tm),)  -- one jnp.dot per M tile, f32 MXU accumulation.
# ----------------------------------------------------------------------------
def _gemm_bias_kernel(x_ref, w_ref, b_ref, o_ref):
    o_ref[...] = (jnp.dot(x_ref[...], w_ref[...],
                          preferred_element_type=jnp.float32)
                  + b_ref[...]).astype(o_ref.dtype)


def gemm_bias(x, w, bias, *, out_dtype=jnp.float32):
    """(x @ w) + bias with bf16 MXU operands and f32 accumulation.

    x: (M, K), w: (K, N) (kept fully resident in VMEM), bias: (N,).
    Returns (M, N) in out_dtype.
    """
    M, K = x.shape
    N = w.shape[1]

    cap = _vmem_cap_bytes()
    tm_target = 512 if cap >= (96 << 20) else 256   # big tiles on v5e/v6e

    xb = x if x.dtype == jnp.bfloat16 else x.astype(jnp.bfloat16)
    wb = w if w.dtype == jnp.bfloat16 else w.astype(jnp.bfloat16)
    b2 = bias.reshape(1, N).astype(jnp.float32)

    # >=2 M tiles (v7x megacore), tm a multiple of 16 (bf16 sublane packing).
    # No padding of the (large) patches matrix: the last M tile is ragged and
    # Pallas masks its writeback.
    tm = min(tm_target, _round_up(max(pl.cdiv(M, 2), 16), 16))
    M_work = M
    if tm > M:  # tiny-M fallback: a single padded block (never hit at scale)
        tm = _round_up(M, 16)
        xb = jnp.pad(xb, ((0, tm - M), (0, 0)))
        M_work = tm

    grid = (pl.cdiv(M_work, tm),)

    # Explicit VMEM budget: double-buffered x / out tiles + resident weight.
    n_lane = _round_up(N, 128)
    out_isz = jnp.dtype(out_dtype).itemsize
    need = (2 * tm * K * 2            # x tiles (bf16, double buffered)
            + 2 * K * n_lane * 2      # weight (bf16; budget 2 buffers)
            + 2 * tm * n_lane * out_isz
            + 2 * 8 * n_lane * 4)     # bias
    vmem_limit = int(min(max(need + (4 << 20), 16 << 20), int(0.55 * cap)))

    out = pl.pallas_call(
        _gemm_bias_kernel,
        out_shape=jax.ShapeDtypeStruct((M_work, N), out_dtype),
        grid_spec=pltpu.PrefetchScalarGridSpec(
            num_scalar_prefetch=0,
            grid=grid,
            in_specs=[
                pl.BlockSpec((tm, K), lambda i: (i, 0)),   # stream M tiles
                pl.BlockSpec((K, N), lambda i: (0, 0)),    # weight resident
                pl.BlockSpec((1, N), lambda i: (0, 0)),    # bias resident
            ],
            out_specs=pl.BlockSpec((tm, N), lambda i: (i, 0)),
        ),
        compiler_params=pltpu.CompilerParams(
            dimension_semantics=("parallel",),
            vmem_limit_bytes=vmem_limit,
        ),
    )(xb, wb, b2)

    return out[:M] if M_work != M else out


# ----------------------------------------------------------------------------
# im2col (pure data movement, plain JAX, bf16) and conv wrapper.
# ----------------------------------------------------------------------------
def _im2col(x, kh, kw, stride, pad):
    B, H, W, C = x.shape
    xp = jnp.pad(x, ((0, 0), (pad, pad), (pad, pad), (0, 0)))
    Ho = (H + 2 * pad - kh) // stride + 1
    Wo = (W + 2 * pad - kw) // stride + 1
    cols = []
    for i in range(kh):
        for j in range(kw):
            cols.append(xp[:, i:i + stride * Ho:stride,
                           j:j + stride * Wo:stride, :])
    patches = jnp.concatenate(cols, axis=-1)  # (B, Ho, Wo, kh*kw*C), tap-major
    return patches.reshape(B * Ho * Wo, kh * kw * C), Ho, Wo


def conv_gemm(x, w_mat, bias, *, kh, kw, stride, pad, out_dtype=jnp.bfloat16):
    """Conv2d (NHWC) via im2col GEMM; weight/bias are already BN-folded."""
    B = x.shape[0]
    patches, Ho, Wo = _im2col(x, kh, kw, stride, pad)
    y = gemm_bias(patches, w_mat, bias, out_dtype=out_dtype)
    return y.reshape(B, Ho, Wo, -1)


# ----------------------------------------------------------------------------
# AdaptiveAvgPool2d as a constant linear map (PyTorch bin semantics).
# ----------------------------------------------------------------------------
def _adaptive_pool_matrix(H, W, OH, OW):
    P = np.zeros((OH, OW, H, W), np.float32)
    for i in range(OH):
        hs = (i * H) // OH
        he = -(-((i + 1) * H) // OH)
        for j in range(OW):
            ws = (j * W) // OW
            we = -(-((j + 1) * W) // OW)
            P[i, j, hs:he, ws:we] = 1.0 / float((he - hs) * (we - ws))
    return jnp.asarray(P)


def _conv_out_hw(h, w, kh, kw, stride, pad):
    return (h + 2 * pad - kh) // stride + 1, (w + 2 * pad - kw) // stride + 1


# ----------------------------------------------------------------------------
# One-time parameter preparation: BN folding, bf16 GEMM layout, and folding of
# head-conv + adaptive-pool + flatten + FC into one tensor per head.
# ----------------------------------------------------------------------------
def prepare_params(p, *, in_hw, final_feat=(5, 2)):
    H, W = in_hw
    H1, W1 = _conv_out_hw(H, W, 3, 3, 2, 1)
    H2, W2 = _conv_out_hw(H1, W1, 3, 3, 2, 1)
    H3, W3 = _conv_out_hw(H2, W2, 2, 1, 2, 0)
    OH, OW = final_feat

    def fold_conv(w, b, s, t):
        kh, kw, cin, cout = w.shape
        wm = (w * s[None, None, None, :]).reshape(kh * kw * cin, cout)
        return wm.astype(jnp.bfloat16), (b * s + t).astype(jnp.float32)

    q = {}
    q["w1m"], q["b1f"] = fold_conv(p["w1"], p["b1"], p["bn1_scale"], p["bn1_shift"])
    q["w2m"], q["b2f"] = fold_conv(p["w2"], p["b2"], p["bn2_scale"], p["bn2_shift"])
    q["w3m"], q["b3f"] = fold_conv(p["w3"], p["b3"], p["bn3_scale"], p["bn3_shift"])

    C3 = p["w3"].shape[-1]
    planes = p["w_tr"].shape[-1]
    P = _adaptive_pool_matrix(H3, W3, OH, OW)   # (OH, OW, H3, W3)

    def fold_head(w1, b1, s, t, fcw, fcb):
        whf = (w1 * s).reshape(C3, planes)      # BN-folded 1x1 conv weight
        bhf = b1 * s + t
        fcw_r = fcw.reshape(planes, OH, OW, 3)  # PyTorch NCHW flatten order
        A = jnp.einsum("cp,ijhw,pijo->hwco", whf, P, fcw_r)
        const = fcb + jnp.einsum("p,pijo->o", bhf, fcw_r)  # pool weights sum to 1
        return A.astype(jnp.float32), const.astype(jnp.float32)

    q["A_tr"], q["c_tr"] = fold_head(p["w_tr"], p["b_tr"], p["bn_tr_scale"],
                                     p["bn_tr_shift"], p["fc1_w"], p["fc1_b"])
    q["A_rot"], q["c_rot"] = fold_head(p["w_rot"], p["b_rot"], p["bn_rot_scale"],
                                       p["bn_rot_shift"], p["fc2_w"], p["fc2_b"])
    return q


# ----------------------------------------------------------------------------
# Full Aggregation forward (inference semantics).
# ----------------------------------------------------------------------------
def aggregation_forward(x_nchw, q):
    x = jnp.transpose(x_nchw, (0, 2, 3, 1)).astype(jnp.bfloat16)  # NCHW->NHWC

    x = conv_gemm(x, q["w1m"], q["b1f"], kh=3, kw=3, stride=2, pad=1)
    x = conv_gemm(x, q["w2m"], q["b2f"], kh=3, kw=3, stride=2, pad=1)
    x = conv_gemm(x, q["w3m"], q["b3f"], kh=2, kw=1, stride=2, pad=0)

    # Head conv + BN + Dropout2d(identity) + AdaptiveAvgPool2d + flatten + FC,
    # all pre-folded into q["A_*"] / q["c_*"]; tiny contraction in plain JAX.
    xf = x.astype(jnp.float32)
    x_tr = jnp.einsum("bhwc,hwco->bo", xf, q["A_tr"]) + q["c_tr"]
    x_rot = jnp.einsum("bhwc,hwco->bo", xf, q["A_rot"]) + q["c_rot"]
    return x_rot, x_tr


# ----------------------------------------------------------------------------
# Pure-JAX f32 reference (un-fused, un-folded) for correctness checking.
# ----------------------------------------------------------------------------
def reference_forward(x_nchw, p, *, final_feat=(5, 2)):
    x = jnp.transpose(x_nchw, (0, 2, 3, 1)).astype(jnp.float32)

    def conv(x, w, b, s, t, kh, kw, stride, pad):
        patches, Ho, Wo = _im2col(x, kh, kw, stride, pad)
        wm = (w * s[None, None, None, :]).reshape(kh * kw * x.shape[-1], -1)
        y = patches @ wm + (b * s + t)
        return y.reshape(x.shape[0], Ho, Wo, -1)

    x = conv(x, p["w1"], p["b1"], p["bn1_scale"], p["bn1_shift"], 3, 3, 2, 1)
    x = conv(x, p["w2"], p["b2"], p["bn2_scale"], p["bn2_shift"], 3, 3, 2, 1)
    x = conv(x, p["w3"], p["b3"], p["bn3_scale"], p["bn3_shift"], 2, 1, 2, 0)

    B, H3, W3, C3 = x.shape
    OH, OW = final_feat
    P = _adaptive_pool_matrix(H3, W3, OH, OW)

    def head(w1, b1, s, t, fcw, fcb):
        y = x.reshape(-1, C3) @ (w1 * s).reshape(C3, -1) + (b1 * s + t)
        y = y.reshape(B, H3, W3, -1)
        pooled = jnp.einsum("ijhw,bhwc->bcij", P, y)   # (B, C, OH, OW)
        return pooled.reshape(B, -1) @ fcw + fcb

    out_tr = head(p["w_tr"], p["b_tr"], p["bn_tr_scale"], p["bn_tr_shift"],
                  p["fc1_w"], p["fc1_b"])
    out_rot = head(p["w_rot"], p["b_rot"], p["bn_rot_scale"], p["bn_rot_shift"],
                   p["fc2_w"], p["fc2_b"])
    return out_rot, out_tr


# ----------------------------------------------------------------------------
# Deterministic parameter initialization (matches the PyTorch __init__ scheme,
# generated directly in matmul-friendly layout).
# ----------------------------------------------------------------------------
def _kaiming(key, kh, kw, cin, cout):
    fan_in = cin * kh * kw
    std = (2.0 / fan_in) ** 0.5          # kaiming_normal_, mode='fan_in'
    return std * jax.random.normal(key, (kh, kw, cin, cout), jnp.float32)


def _xavier(key, fan_in, fan_out, gain):
    std = gain * (2.0 / (fan_in + fan_out)) ** 0.5
    return std * jax.random.normal(key, (fan_in, fan_out), jnp.float32)


def _bn_affine(c, eps=1e-5):
    gamma = jnp.ones((c,), jnp.float32)
    beta = jnp.zeros((c,), jnp.float32)
    mean = jnp.zeros((c,), jnp.float32)
    var = jnp.ones((c,), jnp.float32)
    scale = gamma / jnp.sqrt(var + eps)
    shift = beta - mean * scale
    return scale, shift


if __name__ == "__main__":
    # Scaled-down but structurally identical configuration
    # (reference defaults: inplanes=768, planes=96, final_feat=(5, 2)).
    inplanes, planes = 32, 8
    final_feat = (5, 2)
    B, H, W = 2, 80, 32   # conv stack: 80x32 -> 40x16 -> 20x8 -> 10x4 spatial

    c4, c2 = planes * 4, planes * 2
    fc_in = planes * final_feat[0] * final_feat[1]

    key = jax.random.PRNGKey(0)
    keys = jax.random.split(key, 8)

    params = {
        "w1": _kaiming(keys[0], 3, 3, inplanes, c4),
        "b1": jnp.zeros((c4,), jnp.float32),
        "w2": _kaiming(keys[1], 3, 3, c4, c4),
        "b2": jnp.zeros((c4,), jnp.float32),
        "w3": _kaiming(keys[2], 2, 1, c4, c2),
        "b3": jnp.zeros((c2,), jnp.float32),
        "w_tr": _kaiming(keys[3], 1, 1, c2, planes),
        "b_tr": jnp.zeros((planes,), jnp.float32),
        "w_rot": _kaiming(keys[4], 1, 1, c2, planes),
        "b_rot": jnp.zeros((planes,), jnp.float32),
        "fc1_w": _xavier(keys[5], fc_in, 3, 0.1),
        "fc1_b": jnp.zeros((3,), jnp.float32),
        "fc2_w": _xavier(keys[6], fc_in, 3, 0.1),
        "fc2_b": jnp.zeros((3,), jnp.float32),
    }
    for name, c in (("bn1", c4), ("bn2", c4), ("bn3", c2),
                    ("bn_tr", planes), ("bn_rot", planes)):
        s, t = _bn_affine(c)
        params[name + "_scale"] = s
        params[name + "_shift"] = t

    x = jax.random.normal(keys[7], (B, inplanes, H, W), jnp.float32)

    # One-time inference-mode parameter prep (BN fold, bf16 GEMM layout,
    # folded head tensors).
    prepped = prepare_params(params, in_hw=(H, W), final_feat=final_feat)
    prepped = jax.tree_util.tree_map(jnp.asarray, prepped)

    fwd = jax.jit(aggregation_forward)
    x_rot, x_tr = fwd(x, prepped)
    jax.block_until_ready((x_rot, x_tr))

    assert x_rot.shape == (B, 3) and x_tr.shape == (B, 3)
    assert x_rot.dtype == jnp.float32 and x_tr.dtype == jnp.float32

    # Validate against the pure-JAX f32 reference (bf16 MXU operands => small
    # drift; accumulation stays f32).
    r_rot, r_tr = reference_forward(x, params, final_feat=final_feat)
    assert bool(jnp.allclose(x_rot, r_rot, rtol=5e-2, atol=5e-2))
    assert bool(jnp.allclose(x_tr, r_tr, rtol=5e-2, atol=5e-2))

    print("KERNEL_OK")
</pallas_src>

<mosaic_0001>
module attributes {stable_mosaic.version = 11 : i64} {
  func.func @_gemm_bias_kernel(%arg0: i32, %arg1: memref<256x288xbf16, #tpu.memory_space<vmem>>, %arg2: memref<288x32xbf16, #tpu.memory_space<vmem>>, %arg3: memref<1x32xf32, #tpu.memory_space<vmem>>, %arg4: memref<256x32xbf16, #tpu.memory_space<vmem>>) attributes {dimension_semantics = [#tpu.dimension_semantics<parallel>], iteration_bounds = array<i64: 5>, scalar_prefetch = 0 : i64, scratch_operands = 0 : i64, tpu.core_type = #tpu.core_type<tc>, window_params = [{transform_indices = @transform_0, window_bounds = array<i64: 256, 288>}, {pipeline_mode = #tpu.pipeline_mode<synchronous>, transform_indices = @transform_1, window_bounds = array<i64: 288, 32>}, {pipeline_mode = #tpu.pipeline_mode<synchronous>, transform_indices = @transform_2, window_bounds = array<i64: 1, 32>}, {transform_indices = @transform_3, window_bounds = array<i64: 256, 32>}]} {
    %c0 = arith.constant 0 : index
    %c0_0 = arith.constant 0 : index
    %0 = vector.load %arg1[%c0, %c0_0] : memref<256x288xbf16, #tpu.memory_space<vmem>>, vector<256x288xbf16>
    %c0_1 = arith.constant 0 : index
    %c0_2 = arith.constant 0 : index
    %1 = vector.load %arg2[%c0_1, %c0_2] : memref<288x32xbf16, #tpu.memory_space<vmem>>, vector<288x32xbf16>
    %cst = arith.constant dense<0.000000e+00> : vector<256x32xf32>
    %2 = tpu.matmul %0, %1, %cst {dimension_numbers = #tpu.dot_dimension_numbers<[1], [0], [0], [1], [0, 0, 1, 1], [], []>} : vector<256x288xbf16>, vector<288x32xbf16>, vector<256x32xf32> -> vector<256x32xf32>
    %c0_3 = arith.constant 0 : index
    %c0_4 = arith.constant 0 : index
    %3 = vector.load %arg3[%c0_3, %c0_4] : memref<1x32xf32, #tpu.memory_space<vmem>>, vector<1x32xf32>
    %4 = vector.broadcast %3 : vector<1x32xf32> to vector<256x32xf32>
    %5 = arith.addf %2, %4 : vector<256x32xf32>
    %6 = arith.truncf %5 : vector<256x32xf32> to vector<256x32xbf16>
    %c0_5 = arith.constant 0 : index
    %c0_6 = arith.constant 0 : index
    %7 = vector.load %arg4[%c0_5, %c0_6] : memref<256x32xbf16, #tpu.memory_space<vmem>>, vector<256x32xbf16>
    tpu.vector_store %arg4[%c0_5, %c0_6], %6 {strides = array<i32>} : memref<256x32xbf16, #tpu.memory_space<vmem>>, vector<256x32xbf16>,
    return
  }
  func.func @transform_0(%arg0: i32) -> (i32, i32) {
    %c0_i32 = arith.constant 0 : i32
    %c0_i32_0 = arith.constant 0 : i32
    return %arg0, %c0_i32 : i32, i32
  }
  func.func @transform_1(%arg0: i32) -> (i32, i32) {
    %c0_i32 = arith.constant 0 : i32
    %c0_i32_0 = arith.constant 0 : i32
    %c0_i32_1 = arith.constant 0 : i32
    return %c0_i32, %c0_i32_0 : i32, i32
  }
  func.func @transform_2(%arg0: i32) -> (i32, i32) {
    %c0_i32 = arith.constant 0 : i32
    %c0_i32_0 = arith.constant 0 : i32
    %c0_i32_1 = arith.constant 0 : i32
    return %c0_i32, %c0_i32_0 : i32, i32
  }
  func.func @transform_3(%arg0: i32) -> (i32, i32) {
    %c0_i32 = arith.constant 0 : i32
    %c0_i32_0 = arith.constant 0 : i32
    return %arg0, %c0_i32 : i32, i32
  }
}

module attributes {stable_mosaic.version = 11 : i64} {
  func.func @_gemm_bias_kernel(%arg0: i32, %arg1: memref<160x288xbf16, #tpu.memory_space<vmem>>, %arg2: memref<288x32xbf16, #tpu.memory_space<vmem>>, %arg3: memref<1x32xf32, #tpu.memory_space<vmem>>, %arg4: memref<160x32xbf16, #tpu.memory_space<vmem>>) attributes {dimension_semantics = [#tpu.dimension_semantics<parallel>], iteration_bounds = array<i64: 2>, scalar_prefetch = 0 : i64, scratch_operands = 0 : i64, tpu.core_type = #tpu.core_type<tc>, window_params = [{transform_indices = @transform_0, window_bounds = array<i64: 160, 288>}, {pipeline_mode = #tpu.pipeline_mode<synchronous>, transform_indices = @transform_1, window_bounds = array<i64: 288, 32>}, {pipeline_mode = #tpu.pipeline_mode<synchronous>, transform_indices = @transform_2, window_bounds = array<i64: 1, 32>}, {transform_indices = @transform_3, window_bounds = array<i64: 160, 32>}]} {
    %c0 = arith.constant 0 : index
    %c0_0 = arith.constant 0 : index
    %0 = vector.load %arg1[%c0, %c0_0] : memref<160x288xbf16, #tpu.memory_space<vmem>>, vector<160x288xbf16>
    %c0_1 = arith.constant 0 : index
    %c0_2 = arith.constant 0 : index
    %1 = vector.load %arg2[%c0_1, %c0_2] : memref<288x32xbf16, #tpu.memory_space<vmem>>, vector<288x32xbf16>
    %cst = arith.constant dense<0.000000e+00> : vector<160x32xf32>
    %2 = tpu.matmul %0, %1, %cst {dimension_numbers = #tpu.dot_dimension_numbers<[1], [0], [0], [1], [0, 0, 1, 1], [], []>} : vector<160x288xbf16>, vector<288x32xbf16>, vector<160x32xf32> -> vector<160x32xf32>
    %c0_3 = arith.constant 0 : index
    %c0_4 = arith.constant 0 : index
    %3 = vector.load %arg3[%c0_3, %c0_4] : memref<1x32xf32, #tpu.memory_space<vmem>>, vector<1x32xf32>
    %4 = vector.broadcast %3 : vector<1x32xf32> to vector<160x32xf32>
    %5 = arith.addf %2, %4 : vector<160x32xf32>
    %6 = arith.truncf %5 : vector<160x32xf32> to vector<160x32xbf16>
    %c0_5 = arith.constant 0 : index
    %c0_6 = arith.constant 0 : index
    %7 = vector.load %arg4[%c0_5, %c0_6] : memref<160x32xbf16, #tpu.memory_space<vmem>>, vector<160x32xbf16>
    tpu.vector_store %arg4[%c0_5, %c0_6], %6 {strides = array<i32>} : memref<160x32xbf16, #tpu.memory_space<vmem>>, vector<160x32xbf16>,
    return
  }
  func.func @transform_0(%arg0: i32) -> (i32, i32) {
    %c0_i32 = arith.constant 0 : i32
    %c0_i32_0 = arith.constant 0 : i32
    return %arg0, %c0_i32 : i32, i32
  }
  func.func @transform_1(%arg0: i32) -> (i32, i32) {
    %c0_i32 = arith.constant 0 : i32
    %c0_i32_0 = arith.constant 0 : i32
    %c0_i32_1 = arith.constant 0 : i32
    return %c0_i32, %c0_i32_0 : i32, i32
  }
  func.func @transform_2(%arg0: i32) -> (i32, i32) {
    %c0_i32 = arith.constant 0 : i32
    %c0_i32_0 = arith.constant 0 : i32
    %c0_i32_1 = arith.constant 0 : i32
    return %c0_i32, %c0_i32_0 : i32, i32
  }
  func.func @transform_3(%arg0: i32) -> (i32, i32) {
    %c0_i32 = arith.constant 0 : i32
    %c0_i32_0 = arith.constant 0 : i32
    return %arg0, %c0_i32 : i32, i32
  }
}

module attributes {stable_mosaic.version = 11 : i64} {
  func.func @_gemm_bias_kernel(%arg0: i32, %arg1: memref<48x64xbf16, #tpu.memory_space<vmem>>, %arg2: memref<64x16xbf16, #tpu.memory_space<vmem>>, %arg3: memref<1x16xf32, #tpu.memory_space<vmem>>, %arg4: memref<48x16xbf16, #tpu.memory_space<vmem>>) attributes {dimension_semantics = [#tpu.dimension_semantics<parallel>], iteration_bounds = array<i64: 2>, scalar_prefetch = 0 : i64, scratch_operands = 0 : i64, tpu.core_type = #tpu.core_type<tc>, window_params = [{transform_indices = @transform_0, window_bounds = array<i64: 48, 64>}, {pipeline_mode = #tpu.pipeline_mode<synchronous>, transform_indices = @transform_1, window_bounds = array<i64: 64, 16>}, {pipeline_mode = #tpu.pipeline_mode<synchronous>, transform_indices = @transform_2, window_bounds = array<i64: 1, 16>}, {transform_indices = @transform_3, window_bounds = array<i64: 48, 16>}]} {
    %c0 = arith.constant 0 : index
    %c0_0 = arith.constant 0 : index
    %0 = vector.load %arg1[%c0, %c0_0] : memref<48x64xbf16, #tpu.memory_space<vmem>>, vector<48x64xbf16>
    %c0_1 = arith.constant 0 : index
    %c0_2 = arith.constant 0 : index
    %1 = vector.load %arg2[%c0_1, %c0_2] : memref<64x16xbf16, #tpu.memory_space<vmem>>, vector<64x16xbf16>
    %cst = arith.constant dense<0.000000e+00> : vector<48x16xf32>
    %2 = tpu.matmul %0, %1, %cst {dimension_numbers = #tpu.dot_dimension_numbers<[1], [0], [0], [1], [0, 0, 1, 1], [], []>} : vector<48x64xbf16>, vector<64x16xbf16>, vector<48x16xf32> -> vector<48x16xf32>
    %c0_3 = arith.constant 0 : index
    %c0_4 = arith.constant 0 : index
    %3 = vector.load %arg3[%c0_3, %c0_4] : memref<1x16xf32, #tpu.memory_space<vmem>>, vector<1x16xf32>
    %4 = vector.broadcast %3 : vector<1x16xf32> to vector<48x16xf32>
    %5 = arith.addf %2, %4 : vector<48x16xf32>
    %6 = arith.truncf %5 : vector<48x16xf32> to vector<48x16xbf16>
    %c0_5 = arith.constant 0 : index
    %c0_6 = arith.constant 0 : index
    %7 = vector.load %arg4[%c0_5, %c0_6] : memref<48x16xbf16, #tpu.memory_space<vmem>>, vector<48x16xbf16>
    tpu.vector_store %arg4[%c0_5, %c0_6], %6 {strides = array<i32>} : memref<48x16xbf16, #tpu.memory_space<vmem>>, vector<48x16xbf16>,
    return
  }
  func.func @transform_0(%arg0: i32) -> (i32, i32) {
    %c0_i32 = arith.constant 0 : i32
    %c0_i32_0 = arith.constant 0 : i32
    return %arg0, %c0_i32 : i32, i32
  }
  func.func @transform_1(%arg0: i32) -> (i32, i32) {
    %c0_i32 = arith.constant 0 : i32
    %c0_i32_0 = arith.constant 0 : i32
    %c0_i32_1 = arith.constant 0 : i32
    return %c0_i32, %c0_i32_0 : i32, i32
  }
  func.func @transform_2(%arg0: i32) -> (i32, i32) {
    %c0_i32 = arith.constant 0 : i32
    %c0_i32_0 = arith.constant 0 : i32
    %c0_i32_1 = arith.constant 0 : i32
    return %c0_i32, %c0_i32_0 : i32, i32
  }
  func.func @transform_3(%arg0: i32) -> (i32, i32) {
    %c0_i32 = arith.constant 0 : i32
    %c0_i32_0 = arith.constant 0 : i32
    return %arg0, %c0_i32 : i32, i32
  }
}

</mosaic_0001>

<llo_original>
// kernel: aggregation_forward.3
$region0: #{aggregation_forward.3}
  #allocation0 [shape = 'u32[]', space=smem, size = 0x4, offset = 0x4, fixed_abs, tag = 'smem constant byte address 0x4 - core index']
  #allocation1 [shape = 'u32[144,128]{1,0:T(1,128)}', space=vmem, size = 0x12000, scoped, tag = 'internal scratch']
  %s0 = inlined_call_operand.vmem [shape: bf16[1280,288], index: 0, kind: input, shape index: {}]
  %s1 = inlined_call_operand.vmem [shape: bf16[288,32], index: 1, kind: input, shape index: {}]
  %s2 = inlined_call_operand.vmem [shape: f32[1,32], index: 2, kind: input, shape index: {}]
  %s3 = inlined_call_operand.vmem [shape: bf16[1280,32], index: 3, kind: output, shape index: {}]
  %s4 = sld [smem:[#allocation0]]
  $region45: #{aggregation_forward.3} parent=0
    _
  %s6 = ssub.s32 1, %s4
  %s7 = scalar_select 0, %s6, %s4
  loop: start=0, step=1, limit=7
  $region2: #{aggregation_forward.3} parent=0 // loop_pre_header
    _
  $region3: #{aggregation_forward.3} parent=0 // loop_header
    %s9 = sphi 0, %s13
    %p10 = scmp.ge.s32.totalorder %s9, 7
    %s19 = sphi 0, %s21
    %s22 = sphi 0, %s19
    %s23 = sphi 0, %s22
    %s39 = sphi 0, %s23
    %s43 = sphi 0, %s43
    %s45 = sphi 0, %s43
    %s46 = sphi 0, %s45
    %s60 = sphi 0, %s46
    %s64 = sphi 0, %s64
    %s66 = sphi 0, %s64
    %s67 = sphi 0, %s66
    %s81 = sphi 0, %s67
    %s87 = sphi 0, %s89
    %s90 = sphi 0, %s87
    %s91 = sphi 0, %s90
    %s107 = sphi 0, %s91
  $region4: #{aggregation_forward.3} parent=0 // loop_header_branch
    %12 = sbr.rel (%p10) target = $region8
  $region5: #{aggregation_forward.3} parent=0 // loop_body
    %s14 = ssub.s32 %s9, 1
    %s15 = ssub.s32 %s9, 2
    %s16 = sadd.s32 %s9, 1
    %s17 = ssub.s32 %s9, %s16
    %p18 = scmp.eq.s32.totalorder %s17, 0
    %s20 = sadd.s32 %s19, 1
    %s21 = scalar_select %p18, %s19, %s20
    %p24 = pneg %p18
    %p25 = scmp.eq.s32.totalorder %s9, 4
    %p26 = por %p24, %p25
    %p27 = scmp.ne.s32.totalorder %s19, %s22
    %p28 = scmp.eq.s32.totalorder %s9, 0
    %p29 = por %p27, %p28
    %p30 = scmp.ne.s32.totalorder %s19, %s22
    %p31 = scmp.eq.s32.totalorder %s14, 4
    %p32 = por %p30, %p31
    %p33 = scmp.ne.s32.totalorder %s22, %s23
    %p34 = scmp.eq.s32.totalorder %s14, 0
    %p35 = por %p33, %p34
    %p36 = scmp.ne.s32.totalorder %s22, %s23
    %p37 = scmp.eq.s32.totalorder %s15, 4
    %p38 = por %p36, %p37
    %p40 = scmp.ne.s32.totalorder %s23, %s39
    %p41 = scmp.eq.s32.totalorder %s15, 0
    %p42 = por %p40, %p41
    %s44 = sadd.s32 %s43, 1
    %p47 = scmp.eq.s32.totalorder %s9, 4
    %p48 = scmp.ne.s32.totalorder %s43, %s45
    %p49 = scmp.eq.s32.totalorder %s9, 0
    %p50 = por %p48, %p49
    %p51 = scmp.ne.s32.totalorder %s43, %s45
    %p52 = scmp.eq.s32.totalorder %s14, 4
    %p53 = por %p51, %p52
    %p54 = scmp.ne.s32.totalorder %s45, %s46
    %p55 = scmp.eq.s32.totalorder %s14, 0
    %p56 = por %p54, %p55
    %p57 = scmp.ne.s32.totalorder %s45, %s46
    %p58 = scmp.eq.s32.totalorder %s15, 4
    %p59 = por %p57, %p58
    %p61 = scmp.ne.s32.totalorder %s46, %s60
    %p62 = scmp.eq.s32.totalorder %s15, 0
    %p63 = por %p61, %p62
    %s65 = sadd.s32 %s64, 1
    %p68 = scmp.eq.s32.totalorder %s9, 4
    %p69 = scmp.ne.s32.totalorder %s64, %s66
    %p70 = scmp.eq.s32.totalorder %s9, 0
    %p71 = por %p69, %p70
    %p72 = scmp.ne.s32.totalorder %s64, %s66
    %p73 = scmp.eq.s32.totalorder %s14, 4
    %p74 = por %p72, %p73
    %p75 = scmp.ne.s32.totalorder %s66, %s67
    %p76 = scmp.eq.s32.totalorder %s14, 0
    %p77 = por %p75, %p76
    %p78 = scmp.ne.s32.totalorder %s66, %s67
    %p79 = scmp.eq.s32.totalorder %s15, 4
    %p80 = por %p78, %p79
    %p82 = scmp.ne.s32.totalorder %s67, %s81
    %p83 = scmp.eq.s32.totalorder %s15, 0
    %p84 = por %p82, %p83
    %s85 = ssub.s32 %s9, %s16
    %p86 = scmp.eq.s32.totalorder %s85, 0
    %s88 = sadd.s32 %s87, 1
    %s89 = scalar_select %p86, %s87, %s88
    %p92 = pneg %p86
    %p93 = scmp.eq.s32.totalorder %s9, 4
    %p94 = por %p92, %p93
    %p95 = scmp.ne.s32.totalorder %s87, %s90
    %p96 = scmp.eq.s32.totalorder %s9, 0
    %p97 = por %p95, %p96
    %p98 = scmp.ne.s32.totalorder %s87, %s90
    %p99 = scmp.eq.s32.totalorder %s14, 4
    %p100 = por %p98, %p99
    %p101 = scmp.ne.s32.totalorder %s90, %s91
    %p102 = scmp.eq.s32.totalorder %s14, 0
    %p103 = por %p101, %p102
    %p104 = scmp.ne.s32.totalorder %s90, %s91
    %p105 = scmp.eq.s32.totalorder %s15, 4
    %p106 = por %p104, %p105
    %p108 = scmp.ne.s32.totalorder %s91, %s107
    %p109 = scmp.eq.s32.totalorder %s15, 0
    %p110 = por %p108, %p109
    %p111 = scmp.le.s32.totalorder 1, %s9
    %p112 = scmp.lt.s32.totalorder %s9, 6
    %p113 = pnand %p111, %p112
    %p114 = pneg %p113
    // Predicated region
    $region9: #{aggregation_forward.3} parent=5 // pred_check
      _
    $region10: #{aggregation_forward.3} parent=5 // pred_check_branch
      %116 = sbr.rel (%p113) target = $region12
    $region11: #{aggregation_forward.3} parent=5 // pred_region
      %s117 = ssub.s32 %s9, 1
      // Predicated region
      $region13: #{aggregation_forward.3} parent=11 // pred_check
        %p118 = pneg %p56
      $region14: #{aggregation_forward.3} parent=11 // pred_check_branch
        %120 = sbr.rel (%p118) target = $region16
      $region15: #{aggregation_forward.3} parent=11 // pred_region
        _
      $region16: #{aggregation_forward.3} parent=11 // pred_fallthru
        _
      // Predicated region
      $region17: #{aggregation_forward.3} parent=11 // pred_check
        %p121 = pneg %p77
      $region18: #{aggregation_forward.3} parent=11 // pred_check_branch
        %123 = sbr.rel (%p121) target = $region20
      $region19: #{aggregation_forward.3} parent=11 // pred_region
        _
      $region20: #{aggregation_forward.3} parent=11 // pred_fallthru
        _
    $region12: #{aggregation_forward.3} parent=5 // pred_fallthru
      _
    %p124 = scmp.lt.s32.totalorder %s9, 5
    // Predicated region
    $region21: #{aggregation_forward.3} parent=5 // pred_check
      %p125 = pneg %p124
    $region22: #{aggregation_forward.3} parent=5 // pred_check_branch
      %127 = sbr.rel (%p125) target = $region24
    $region23: #{aggregation_forward.3} parent=5 // pred_region
      // Predicated region
      $region25: #{aggregation_forward.3} parent=23 // pred_check
        %p128 = pneg %p29
      $region26: #{aggregation_forward.3} parent=23 // pred_check_branch
        %130 = sbr.rel (%p128) target = $region28
      $region27: #{aggregation_forward.3} parent=23 // pred_region
        %s131 = smul.u32 32, %s9
        %p132 = scmp.lt.s32.totalorder %s131, 159
        %s133 = scalar_select %p132, %s131, 159
        %s134 = smul.addr %s133, 3
        %s135 = smul.addr %s134, 4
        %s136 = scalar_lea.vmem %s0, %s135
        %s137 = smul.u32 32, %s9
      $region28: #{aggregation_forward.3} parent=23 // pred_fallthru
        _
    $region24: #{aggregation_forward.3} parent=5 // pred_fallthru
      _
    %p138 = scmp.le.s32.totalorder 1, %s9
    %p139 = scmp.lt.s32.totalorder %s9, 6
    %p140 = pnand %p138, %p139
    %p141 = pneg %p140
    // Predicated region
    $region29: #{aggregation_forward.3} parent=5 // pred_check
      _
    $region30: #{aggregation_forward.3} parent=5 // pred_check_branch
      %143 = sbr.rel (%p140) target = $region32
    $region31: #{aggregation_forward.3} parent=5 // pred_region
      %s144 = ssub.s32 %s9, 1
      %s145 = smul.u32 32, %s14
      %p146 = scmp.lt.s32.totalorder %s145, 159
      %s147 = scalar_select %p146, %s145, 159
      %s148 = smul.addr %s147, 3
      %s149 = smul.addr %s148, 4
      %s150 = scalar_lea.vmem %s0, %s149
      %p151 = pneg %p35
      %p152 = pneg %p32
      %p153 = pneg %p56
      %p154 = pneg %p53
      %p155 = pneg %p77
      %p156 = pneg %p74
      %p157 = pneg %p103
      %p158 = pneg %p100
      %s159 = smul.u32 32, %s14
      %p160 = scmp.lt.s32.totalorder %s159, 159
      %s161 = scalar_select %p160, %s159, 159
      %s162 = smul.addr %s161, 4
      %s163 = scalar_lea.vmem %s3, %s162
      %s164 = smul.u32 32, %s14
      %p165 = scmp.lt.s32.totalorder %s164, 159
      %s166 = scalar_select %p165, %s164, 159
      %s167 = smul.addr %s166, 3
      %s168 = smul.addr %s167, 4
      %s169 = scalar_lea.vmem %s0, %s168
      %s170 = smul.u32 32, %s14
      %s171 = smul.u32 32, %s14
      %p172 = scmp.lt.s32.totalorder %s171, 159
      %s173 = scalar_select %p172, %s171, 159
      %s174 = smul.addr %s173, 4
      %s175 = scalar_lea.vmem %s3, %s174
      %s176 = smul.u32 32, %s14
      %v178 = vld [vmem:[%s169] sm:$0xff]
      %v179 = vld [vmem:[%s169 + $0x8] sm:$0xf]
      %v180 = vld [vmem:[%s169 + $0xc] sm:$0xff]
      %v181 = vld [vmem:[%s169 + $0x14] sm:$0xf]
      %v182 = vld [vmem:[%s169 + $0x18] sm:$0xff]
      %v183 = vld [vmem:[%s169 + $0x20] sm:$0xf]
      %v184 = vld [vmem:[%s169 + $0x24] sm:$0xff]
      %v185 = vld [vmem:[%s169 + $0x2c] sm:$0xf]
      %v186 = vld [vmem:[%s169 + $0x30] sm:$0xff]
      %v187 = vld [vmem:[%s169 + $0x38] sm:$0xf]
      %v188 = vld [vmem:[%s169 + $0x3c] sm:$0xff]
      %v189 = vld [vmem:[%s169 + $0x44] sm:$0xf]
      %v190 = vld [vmem:[%s169 + $0x48] sm:$0xff]
      %v191 = vld [vmem:[%s169 + $0x50] sm:$0xf]
      %v192 = vld [vmem:[%s169 + $0x54] sm:$0xff]
      %v193 = vld [vmem:[%s169 + $0x5c] sm:$0xf]
      %v194 = vld [vmem:[%s169 + $0x60] sm:$0xff]
      %v195 = vld [vmem:[%s169 + $0x68] sm:$0xf]
      %v196 = vld [vmem:[%s169 + $0x6c] sm:$0xff]
      %v197 = vld [vmem:[%s169 + $0x74] sm:$0xf]
      %v198 = vld [vmem:[%s169 + $0x78] sm:$0xff]
      %v199 = vld [vmem:[%s169 + $0x80] sm:$0xf]
      %v200 = vld [vmem:[%s169 + $0x84] sm:$0xff]
      %v201 = vld [vmem:[%s169 + $0x8c] sm:$0xf]
      %v202 = vld [vmem:[%s169 + $0x90] sm:$0xff]
      %v203 = vld [vmem:[%s169 + $0x98] sm:$0xf]
      %v204 = vld [vmem:[%s169 + $0x9c] sm:$0xff]
      %v205 = vld [vmem:[%s169 + $0xa4] sm:$0xf]
      %v206 = vld [vmem:[%s169 + $0xa8] sm:$0xff]
      %v207 = vld [vmem:[%s169 + $0xb0] sm:$0xf]
      %v208 = vld [vmem:[%s169 + $0xb4] sm:$0xff]
      %v209 = vld [vmem:[%s169 + $0xbc] sm:$0xf]
      %v210 = vld [vmem:[%s169 + $0xc0] sm:$0xff]
      %v211 = vld [vmem:[%s169 + $0xc8] sm:$0xf]
      %v212 = vld [vmem:[%s169 + $0xcc] sm:$0xff]
      %v213 = vld [vmem:[%s169 + $0xd4] sm:$0xf]
      %v214 = vld [vmem:[%s169 + $0xd8] sm:$0xff]
      %v215 = vld [vmem:[%s169 + $0xe0] sm:$0xf]
      %v216 = vld [vmem:[%s169 + $0xe4] sm:$0xff]
      %v217 = vld [vmem:[%s169 + $0xec] sm:$0xf]
      %v218 = vld [vmem:[%s169 + $0xf0] sm:$0xff]
      %v219 = vld [vmem:[%s169 + $0xf8] sm:$0xf]
      %v220 = vld [vmem:[%s169 + $0xfc] sm:$0xff]
      %v221 = vld [vmem:[%s169 + $0x104] sm:$0xf]
      %v222 = vld [vmem:[%s169 + $0x108] sm:$0xff]
      %v223 = vld [vmem:[%s169 + $0x110] sm:$0xf]
      %v224 = vld [vmem:[%s169 + $0x114] sm:$0xff]
      %v225 = vld [vmem:[%s169 + $0x11c] sm:$0xf]
      %v226 = vld [vmem:[%s169 + $0x120] sm:$0xff]
      %v227 = vld [vmem:[%s169 + $0x128] sm:$0xf]
      %v228 = vld [vmem:[%s169 + $0x12c] sm:$0xff]
      %v229 = vld [vmem:[%s169 + $0x134] sm:$0xf]
      %v230 = vld [vmem:[%s169 + $0x138] sm:$0xff]
      %v231 = vld [vmem:[%s169 + $0x140] sm:$0xf]
      %v232 = vld [vmem:[%s169 + $0x144] sm:$0xff]
      %v233 = vld [vmem:[%s169 + $0x14c] sm:$0xf]
      %v234 = vld [vmem:[%s169 + $0x150] sm:$0xff]
      %v235 = vld [vmem:[%s169 + $0x158] sm:$0xf]
      %v236 = vld [vmem:[%s169 + $0x15c] sm:$0xff]
      %v237 = vld [vmem:[%s169 + $0x164] sm:$0xf]
      %v238 = vld [vmem:[%s169 + $0x168] sm:$0xff]
      %v239 = vld [vmem:[%s169 + $0x170] sm:$0xf]
      %v240 = vld [vmem:[%s169 + $0x174] sm:$0xff]
      %v241 = vld [vmem:[%s169 + $0x17c] sm:$0xf]
      %v242 = vld [vmem:[%s1] sm:$0xf]
      %v243 = vld [vmem:[%s1 + $0x4] sm:$0xf]
      %v244 = vld [vmem:[%s1 + $0x8] sm:$0xf]
      %v245 = vld [vmem:[%s1 + $0xc] sm:$0xf]
      %v246 = vld [vmem:[%s1 + $0x10] sm:$0xf]
      %v247 = vld [vmem:[%s1 + $0x14] sm:$0xf]
      %v248 = vld [vmem:[%s1 + $0x18] sm:$0xf]
      %v249 = vld [vmem:[%s1 + $0x1c] sm:$0xf]
      %v250 = vld [vmem:[%s1 + $0x20] sm:$0xf]
      %v251 = vld [vmem:[%s1 + $0x24] sm:$0xf]
      %v252 = vld [vmem:[%s1 + $0x28] sm:$0xf]
      %v253 = vld [vmem:[%s1 + $0x2c] sm:$0xf]
      %v254 = vld [vmem:[%s1 + $0x30] sm:$0xf]
      %v255 = vld [vmem:[%s1 + $0x34] sm:$0xf]
      %v256 = vld [vmem:[%s1 + $0x38] sm:$0xf]
      %v257 = vld [vmem:[%s1 + $0x3c] sm:$0xf]
      %v258 = vld [vmem:[%s1 + $0x40] sm:$0xf]
      %v259 = vld [vmem:[%s1 + $0x44] sm:$0xf]
      %v260 = vld [vmem:[%s1 + $0x48] sm:$0xf]
      %v261 = vld [vmem:[%s1 + $0x4c] sm:$0xf]
      %v262 = vld [vmem:[%s1 + $0x50] sm:$0xf]
      %v263 = vld [vmem:[%s1 + $0x54] sm:$0xf]
      %v264 = vld [vmem:[%s1 + $0x58] sm:$0xf]
      %v265 = vld [vmem:[%s1 + $0x5c] sm:$0xf]
      %v266 = vld [vmem:[%s1 + $0x60] sm:$0xf]
      %v267 = vld [vmem:[%s1 + $0x64] sm:$0xf]
      %v268 = vld [vmem:[%s1 + $0x68] sm:$0xf]
      %v269 = vld [vmem:[%s1 + $0x6c] sm:$0xf]
      %v270 = vld [vmem:[%s1 + $0x70] sm:$0xf]
      %v271 = vld [vmem:[%s1 + $0x74] sm:$0xf]
      %v272 = vld [vmem:[%s1 + $0x78] sm:$0xf]
      %v273 = vld [vmem:[%s1 + $0x7c] sm:$0xf]
      %v274 = vld [vmem:[%s1 + $0x80] sm:$0xf]
      %v275 = vld [vmem:[%s1 + $0x84] sm:$0xf]
      %v276 = vld [vmem:[%s1 + $0x88] sm:$0xf]
      %v277 = vld [vmem:[%s1 + $0x8c] sm:$0xf]
      %v278 = vld [vmem:[%s2] sm:$0x1]
      %v280 = vlaneseq
      %v281 = vshrl.u32 %v280, 7
      %v282 = vsub.s32 0, %v281
      %v283 = vrot.slane %v278, %v282
      %v349 = vunpack.c.l.b16 %v178
      %v350 = vunpack.c.h.b16 %v178
      %v351 = vunpack.c.l.b16 %v179
      %v352 = vunpack.c.l.b16 %v180
      %v353 = vunpack.c.h.b16 %v180
      %v354 = vunpack.c.l.b16 %v181
      %v355 = vunpack.c.l.b16 %v182
      %v356 = vunpack.c.h.b16 %v182
      %v357 = vunpack.c.l.b16 %v183
      %v358 = vunpack.c.l.b16 %v184
      %v359 = vunpack.c.h.b16 %v184
      %v360 = vunpack.c.l.b16 %v185
      %v361 = vunpack.c.l.b16 %v186
      %v362 = vunpack.c.h.b16 %v186
      %v363 = vunpack.c.l.b16 %v187
      %v364 = vunpack.c.l.b16 %v188
      %v365 = vunpack.c.h.b16 %v188
      %v366 = vunpack.c.l.b16 %v189
      %v367 = vunpack.c.l.b16 %v190
      %v368 = vunpack.c.h.b16 %v190
      %v369 = vunpack.c.l.b16 %v191
      %v370 = vunpack.c.l.b16 %v192
      %v371 = vunpack.c.h.b16 %v192
      %v372 = vunpack.c.l.b16 %v193
      %v373 = vunpack.c.l.b16 %v194
      %v374 = vunpack.c.h.b16 %v194
      %v375 = vunpack.c.l.b16 %v195
      %v376 = vunpack.c.l.b16 %v196
      %v377 = vunpack.c.h.b16 %v196
      %v378 = vunpack.c.l.b16 %v197
      %v379 = vunpack.c.l.b16 %v198
      %v380 = vunpack.c.h.b16 %v198
      %v381 = vunpack.c.l.b16 %v199
      %v382 = vunpack.c.l.b16 %v200
      %v383 = vunpack.c.h.b16 %v200
      %v384 = vunpack.c.l.b16 %v201
      %v385 = vunpack.c.l.b16 %v202
      %v386 = vunpack.c.h.b16 %v202
      %v387 = vunpack.c.l.b16 %v203
      %v388 = vunpack.c.l.b16 %v204
      %v389 = vunpack.c.h.b16 %v204
      %v390 = vunpack.c.l.b16 %v205
      %v391 = vunpack.c.l.b16 %v206
      %v392 = vunpack.c.h.b16 %v206
      %v393 = vunpack.c.l.b16 %v207
      %v394 = vunpack.c.l.b16 %v208
      %v395 = vunpack.c.h.b16 %v208
      %v396 = vunpack.c.l.b16 %v209
      %v397 = vunpack.c.l.b16 %v210
      %v398 = vunpack.c.h.b16 %v210
      %v399 = vunpack.c.l.b16 %v211
      %v400 = vunpack.c.l.b16 %v212
      %v401 = vunpack.c.h.b16 %v212
      %v402 = vunpack.c.l.b16 %v213
      %v403 = vunpack.c.l.b16 %v214
      %v404 = vunpack.c.h.b16 %v214
      %v405 = vunpack.c.l.b16 %v215
      %v406 = vunpack.c.l.b16 %v216
      %v407 = vunpack.c.h.b16 %v216
      %v408 = vunpack.c.l.b16 %v217
      %v409 = vunpack.c.l.b16 %v218
      %v410 = vunpack.c.h.b16 %v218
      %v411 = vunpack.c.l.b16 %v219
      %v412 = vunpack.c.l.b16 %v220
      %v413 = vunpack.c.h.b16 %v220
      %v414 = vunpack.c.l.b16 %v221
      %v415 = vunpack.c.l.b16 %v222
      %v416 = vunpack.c.h.b16 %v222
      %v417 = vunpack.c.l.b16 %v223
      %v418 = vunpack.c.l.b16 %v224
      %v419 = vunpack.c.h.b16 %v224
      %v420 = vunpack.c.l.b16 %v225
      %v421 = vunpack.c.l.b16 %v226
      %v422 = vunpack.c.h.b16 %v226
      %v423 = vunpack.c.l.b16 %v227
      %v424 = vunpack.c.l.b16 %v228
      %v425 = vunpack.c.h.b16 %v228
      %v426 = vunpack.c.l.b16 %v229
      %v427 = vunpack.c.l.b16 %v230
      %v428 = vunpack.c.h.b16 %v230
      %v429 = vunpack.c.l.b16 %v231
      %v430 = vunpack.c.l.b16 %v232
      %v431 = vunpack.c.h.b16 %v232
      %v432 = vunpack.c.l.b16 %v233
      %v433 = vunpack.c.l.b16 %v234
      %v434 = vunpack.c.h.b16 %v234
      %v435 = vunpack.c.l.b16 %v235
      %v436 = vunpack.c.l.b16 %v236
      %v437 = vunpack.c.h.b16 %v236
      %v438 = vunpack.c.l.b16 %v237
      %v439 = vunpack.c.l.b16 %v238
      %v440 = vunpack.c.h.b16 %v238
      %v441 = vunpack.c.l.b16 %v239
      %v442 = vunpack.c.l.b16 %v240
      %v443 = vunpack.c.h.b16 %v240
      %v444 = vunpack.c.l.b16 %v241
      %v445 = vpack.c.b16 %v352, %v349
      %v446 = vpack.c.b16 %v353, %v350
      %v447 = vpack.c.b16 %v354, %v351
      %v448 = vpack.c.b16 %v358, %v355
      %v449 = vpack.c.b16 %v359, %v356
      %v450 = vpack.c.b16 %v360, %v357
      %v451 = vpack.c.b16 %v364, %v361
      %v452 = vpack.c.b16 %v365, %v362
      %v453 = vpack.c.b16 %v366, %v363
      %v454 = vpack.c.b16 %v370, %v367
      %v455 = vpack.c.b16 %v371, %v368
      %v456 = vpack.c.b16 %v372, %v369
      %v457 = vpack.c.b16 %v376, %v373
      %v458 = vpack.c.b16 %v377, %v374
      %v459 = vpack.c.b16 %v378, %v375
      %v460 = vpack.c.b16 %v382, %v379
      %v461 = vpack.c.b16 %v383, %v380
      %v462 = vpack.c.b16 %v384, %v381
      %v463 = vpack.c.b16 %v388, %v385
      %v464 = vpack.c.b16 %v389, %v386
      %v465 = vpack.c.b16 %v390, %v387
      %v466 = vpack.c.b16 %v394, %v391
      %v467 = vpack.c.b16 %v395, %v392
      %v468 = vpack.c.b16 %v396, %v393
      %v469 = vpack.c.b16 %v400, %v397
      %v470 = vpack.c.b16 %v401, %v398
      %v471 = vpack.c.b16 %v402, %v399
      %v472 = vpack.c.b16 %v406, %v403
      %v473 = vpack.c.b16 %v407, %v404
      %v474 = vpack.c.b16 %v408, %v405
      %v475 = vpack.c.b16 %v412, %v409
      %v476 = vpack.c.b16 %v413, %v410
      %v477 = vpack.c.b16 %v414, %v411
      %v478 = vpack.c.b16 %v418, %v415
      %v479 = vpack.c.b16 %v419, %v416
      %v480 = vpack.c.b16 %v420, %v417
      %v481 = vpack.c.b16 %v424, %v421
      %v482 = vpack.c.b16 %v425, %v422
      %v483 = vpack.c.b16 %v426, %v423
      %v484 = vpack.c.b16 %v430, %v427
      %v485 = vpack.c.b16 %v431, %v428
      %v486 = vpack.c.b16 %v432, %v429
      %v487 = vpack.c.b16 %v436, %v433
      %v488 = vpack.c.b16 %v437, %v434
      %v489 = vpack.c.b16 %v438, %v435
      %v490 = vpack.c.b16 %v442, %v439
      %v491 = vpack.c.b16 %v443, %v440
      %v492 = vpack.c.b16 %v444, %v441
      %v561 = vunpack.c.l.b16 %v242
      %v562 = vunpack.c.l.b16 %v243
      %v563 = vunpack.c.l.b16 %v244
      %v564 = vunpack.c.l.b16 %v245
      %v565 = vunpack.c.l.b16 %v246
      %v566 = vunpack.c.l.b16 %v247
      %v567 = vunpack.c.l.b16 %v248
      %v568 = vunpack.c.l.b16 %v249
      %v569 = vunpack.c.l.b16 %v250
      %v570 = vunpack.c.l.b16 %v251
      %v571 = vunpack.c.l.b16 %v252
      %v572 = vunpack.c.l.b16 %v253
      %v573 = vunpack.c.l.b16 %v254
      %v574 = vunpack.c.l.b16 %v255
      %v575 = vunpack.c.l.b16 %v256
      %v576 = vunpack.c.l.b16 %v257
      %v577 = vunpack.c.l.b16 %v258
      %v578 = vunpack.c.l.b16 %v259
      %v579 = vunpack.c.l.b16 %v260
      %v580 = vunpack.c.l.b16 %v261
      %v581 = vunpack.c.l.b16 %v262
      %v582 = vunpack.c.l.b16 %v263
      %v583 = vunpack.c.l.b16 %v264
      %v584 = vunpack.c.l.b16 %v265
      %v585 = vunpack.c.l.b16 %v266
      %v586 = vunpack.c.l.b16 %v267
      %v587 = vunpack.c.l.b16 %v268
      %v588 = vunpack.c.l.b16 %v269
      %v589 = vunpack.c.l.b16 %v270
      %v590 = vunpack.c.l.b16 %v271
      %v591 = vunpack.c.l.b16 %v272
      %v592 = vunpack.c.l.b16 %v273
      %v593 = vunpack.c.l.b16 %v274
      %v594 = vunpack.c.l.b16 %v275
      %v595 = vunpack.c.l.b16 %v276
      %v596 = vunpack.c.l.b16 %v277
      %v597 = vpack.c.b16 %v562, %v561
      %v598 = vpack.c.b16 %v564, %v563
      %v599 = vpack.c.b16 %v566, %v565
      %v600 = vpack.c.b16 %v568, %v567
      %v601 = vpack.c.b16 %v570, %v569
      %v602 = vpack.c.b16 %v572, %v571
      %v603 = vpack.c.b16 %v574, %v573
      %v604 = vpack.c.b16 %v576, %v575
      %v605 = vpack.c.b16 %v578, %v577
      %v606 = vpack.c.b16 %v580, %v579
      %v607 = vpack.c.b16 %v582, %v581
      %v608 = vpack.c.b16 %v584, %v583
      %v609 = vpack.c.b16 %v586, %v585
      %v610 = vpack.c.b16 %v588, %v587
      %v611 = vpack.c.b16 %v590, %v589
      %v612 = vpack.c.b16 %v592, %v591
      %v613 = vpack.c.b16 %v594, %v593
      %v614 = vpack.c.b16 %v596, %v595
      %vm633 = vcmask 261120
      %v635 = vsel %vm633, %v447, 0
      %v638 = vsel %vm633, %v450, 0
      %v641 = vsel %vm633, %v453, 0
      %v644 = vsel %vm633, %v456, 0
      %v647 = vsel %vm633, %v459, 0
      %v650 = vsel %vm633, %v462, 0
      %v653 = vsel %vm633, %v465, 0
      %v656 = vsel %vm633, %v468, 0
      %v659 = vsel %vm633, %v471, 0
      %v662 = vsel %vm633, %v474, 0
      %v665 = vsel %vm633, %v477, 0
      %v668 = vsel %vm633, %v480, 0
      %v671 = vsel %vm633, %v483, 0
      %v674 = vsel %vm633, %v486, 0
      %v677 = vsel %vm633, %v489, 0
      %v680 = vsel %vm633, %v492, 0
      %682 = vmatprep.subr.bf16.mxu0 0
      %683 = vmatpush1.bf16.msra.mxu0 %v604
      %684 = vmatprep.subr.bf16.mxu0 0
      %685 = vmatpush1.bf16.msra.mxu0 %v603
      %686 = vmatprep.subr.bf16.mxu0 0
      %687 = vmatpush1.bf16.msra.mxu0 %v602
      %688 = vmatprep.subr.bf16.mxu0 0
      %689 = vmatpush1.bf16.msra.mxu0 %v601
      %690 = vmatprep.subr.bf16.mxu0 0
      %691 = vmatpush1.bf16.msra.mxu0 %v600
      %692 = vmatprep.subr.bf16.mxu0 0
      %693 = vmatpush1.bf16.msra.mxu0 %v599
      %694 = vmatprep.subr.bf16.mxu0 0
      %695 = vmatpush1.bf16.msra.mxu0 %v598
      %696 = vmatprep.subr.bf16.mxu0 0
      %697 = vmatpush1.bf16.msra.mxu0 %v597
      %698 = vmatprep.subr.bf16.mxu0 0
      %699 = vmatpush2.bf16.msra.mxu0 %v612
      %700 = vmatprep.subr.bf16.mxu0 0
      %701 = vmatpush2.bf16.msra.mxu0 %v611
      %702 = vmatprep.subr.bf16.mxu0 0
      %703 = vmatpush2.bf16.msra.mxu0 %v610
      %704 = vmatprep.subr.bf16.mxu0 0
      %705 = vmatpush2.bf16.msra.mxu0 %v609
      %706 = vmatprep.subr.bf16.mxu0 0
      %707 = vmatpush2.bf16.msra.mxu0 %v608
      %708 = vmatprep.subr.bf16.mxu0 0
      %709 = vmatpush2.bf16.msra.mxu0 %v607
      %710 = vmatprep.subr.bf16.mxu0 0
      %711 = vmatpush2.bf16.msra.mxu0 %v606
      %712 = vmatprep.subr.bf16.mxu0 0
      %713 = vmatpush2.bf16.msra.mxu0 %v605
      %714 = vmatprep.mubr.bf16.mxu0 %v446
      %715 = vmatmul.mubr.bf16.gmra.mxu0 %v445
      %v716 = vpop.f32.mrf.mxu0
      %v717 = vadd.f32 %v283, %v716
      %v718 = vpop.f32.mrf.mxu0
      %v719 = vpop.f32.mrf.mxu0
      %v720 = vadd.f32 %v283, %v719
      %v721 = vpop.f32.mrf.mxu0
      %722 = vmatprep.mubr.bf16.mxu0 %v449
      %723 = vmatmul.mubr.bf16.gmra.mxu0 %v448
      %v724 = vpop.f32.mrf.mxu0
      %v725 = vadd.f32 %v283, %v724
      %v726 = vpop.f32.mrf.mxu0
      %v727 = vpop.f32.mrf.mxu0
      %v728 = vadd.f32 %v283, %v727
      %v729 = vpop.f32.mrf.mxu0
      %730 = vmatprep.mubr.bf16.mxu0 %v452
      %731 = vmatmul.mubr.bf16.gmra.mxu0 %v451
      %v732 = vpop.f32.mrf.mxu0
      %v733 = vadd.f32 %v283, %v732
      %v734 = vpop.f32.mrf.mxu0
      %v735 = vpop.f32.mrf.mxu0
      %v736 = vadd.f32 %v283, %v735
      %v737 = vpop.f32.mrf.mxu0
      %738 = vmatprep.mubr.bf16.mxu0 %v455
      %739 = vmatmul.mubr.bf16.gmra.mxu0 %v454
      %v740 = vpop.f32.mrf.mxu0
      %v741 = vadd.f32 %v283, %v740
      %v742 = vpop.f32.mrf.mxu0
      %v743 = vpop.f32.mrf.mxu0
      %v744 = vadd.f32 %v283, %v743
      %v745 = vpop.f32.mrf.mxu0
      %746 = vmatprep.mubr.bf16.mxu0 %v458
      %747 = vmatmul.mubr.bf16.gmra.mxu0 %v457
      %v748 = vpop.f32.mrf.mxu0
      %v749 = vadd.f32 %v283, %v748
      %v750 = vpop.f32.mrf.mxu0
      %v751 = vpop.f32.mrf.mxu0
      %v752 = vadd.f32 %v283, %v751
      %v753 = vpop.f32.mrf.mxu0
      %754 = vmatprep.mubr.bf16.mxu0 %v461
      %755 = vmatmul.mubr.bf16.gmra.mxu0 %v460
      %v756 = vpop.f32.mrf.mxu0
      %v757 = vadd.f32 %v283, %v756
      %v758 = vpop.f32.mrf.mxu0
      %v759 = vpop.f32.mrf.mxu0
      %v760 = vadd.f32 %v283, %v759
      %v761 = vpop.f32.mrf.mxu0
      %762 = vmatprep.mubr.bf16.mxu0 %v464
      %763 = vmatmul.mubr.bf16.gmra.mxu0 %v463
      %v764 = vpop.f32.mrf.mxu0
      %v765 = vadd.f32 %v283, %v764
      %v766 = vpop.f32.mrf.mxu0
      %v767 = vpop.f32.mrf.mxu0
      %v768 = vadd.f32 %v283, %v767
      %v769 = vpop.f32.mrf.mxu0
      %770 = vmatprep.mubr.bf16.mxu0 %v467
      %771 = vmatmul.mubr.bf16.gmra.mxu0 %v466
      %v772 = vpop.f32.mrf.mxu0
      %v773 = vadd.f32 %v283, %v772
      %v774 = vpop.f32.mrf.mxu0
      %v775 = vpop.f32.mrf.mxu0
      %v776 = vadd.f32 %v283, %v775
      %v777 = vpop.f32.mrf.mxu0
      %778 = vmatprep.mubr.bf16.mxu0 %v470
      %779 = vmatmul.mubr.bf16.gmra.mxu0 %v469
      %v780 = vpop.f32.mrf.mxu0
      %v781 = vadd.f32 %v283, %v780
      %v782 = vpop.f32.mrf.mxu0
      %v783 = vpop.f32.mrf.mxu0
      %v784 = vadd.f32 %v283, %v783
      %v785 = vpop.f32.mrf.mxu0
      %786 = vmatprep.mubr.bf16.mxu0 %v473
      %787 = vmatmul.mubr.bf16.gmra.mxu0 %v472
      %v788 = vpop.f32.mrf.mxu0
      %v789 = vadd.f32 %v283, %v788
      %v790 = vpop.f32.mrf.mxu0
      %v791 = vpop.f32.mrf.mxu0
      %v792 = vadd.f32 %v283, %v791
      %v793 = vpop.f32.mrf.mxu0
      %794 = vmatprep.mubr.bf16.mxu0 %v476
      %795 = vmatmul.mubr.bf16.gmra.mxu0 %v475
      %v796 = vpop.f32.mrf.mxu0
      %v797 = vadd.f32 %v283, %v796
      %v798 = vpop.f32.mrf.mxu0
      %v799 = vpop.f32.mrf.mxu0
      %v800 = vadd.f32 %v283, %v799
      %v801 = vpop.f32.mrf.mxu0
      %802 = vmatprep.mubr.bf16.mxu0 %v479
      %803 = vmatmul.mubr.bf16.gmra.mxu0 %v478
      %v804 = vpop.f32.mrf.mxu0
      %v805 = vadd.f32 %v283, %v804
      %v806 = vpop.f32.mrf.mxu0
      %v807 = vpop.f32.mrf.mxu0
      %v808 = vadd.f32 %v283, %v807
      %v809 = vpop.f32.mrf.mxu0
      %810 = vmatprep.mubr.bf16.mxu0 %v482
      %811 = vmatmul.mubr.bf16.gmra.mxu0 %v481
      %v812 = vpop.f32.mrf.mxu0
      %v813 = vadd.f32 %v283, %v812
      %v814 = vpop.f32.mrf.mxu0
      %v815 = vpop.f32.mrf.mxu0
      %v816 = vadd.f32 %v283, %v815
      %v817 = vpop.f32.mrf.mxu0
      %818 = vmatprep.mubr.bf16.mxu0 %v485
      %819 = vmatmul.mubr.bf16.gmra.mxu0 %v484
      %v820 = vpop.f32.mrf.mxu0
      %v821 = vadd.f32 %v283, %v820
      %v822 = vpop.f32.mrf.mxu0
      %v823 = vpop.f32.mrf.mxu0
      %v824 = vadd.f32 %v283, %v823
      %v825 = vpop.f32.mrf.mxu0
      %826 = vmatprep.mubr.bf16.mxu0 %v488
      %827 = vmatmul.mubr.bf16.gmra.mxu0 %v487
      %v828 = vpop.f32.mrf.mxu0
      %v829 = vadd.f32 %v283, %v828
      %v830 = vpop.f32.mrf.mxu0
      %v831 = vpop.f32.mrf.mxu0
      %v832 = vadd.f32 %v283, %v831
      %v833 = vpop.f32.mrf.mxu0
      %834 = vmatprep.mubr.bf16.mxu0 %v491
      %835 = vmatmul.mubr.bf16.gmra.mxu0 %v490
      %v836 = vpop.f32.mrf.mxu0
      %v837 = vadd.f32 %v283, %v836
      %v838 = vpop.f32.mrf.mxu0
      %v839 = vpop.f32.mrf.mxu0
      %v840 = vadd.f32 %v283, %v839
      %v841 = vpop.f32.mrf.mxu0
      %842 = vdwg.mxu0
      %843 = vmatprep.subr.bf16.mxu0 0
      %844 = vmatpush1.bf16.msra.mxu0 0
      %845 = vmatprep.subr.bf16.mxu0 0
      %846 = vmatpush1.bf16.msra.mxu0 0
      %847 = vmatprep.subr.bf16.mxu0 0
      %848 = vmatpush1.bf16.msra.mxu0 0
      %849 = vmatprep.subr.bf16.mxu0 0
      %850 = vmatpush1.bf16.msra.mxu0 0
      %851 = vmatprep.subr.bf16.mxu0 0
      %852 = vmatpush1.bf16.msra.mxu0 0
      %853 = vmatprep.subr.bf16.mxu0 0
      %854 = vmatpush1.bf16.msra.mxu0 0
      %855 = vmatprep.subr.bf16.mxu0 0
      %856 = vmatpush1.bf16.msra.mxu0 %v614
      %857 = vmatprep.subr.bf16.mxu0 0
      %858 = vmatpush1.bf16.msra.mxu0 %v613
      %859 = vmatprep.subr.bf16.mxu0 0
      %860 = vmatpush2.bf16.msra.mxu0 0
      %861 = vmatprep.subr.bf16.mxu0 0
      %862 = vmatpush2.bf16.msra.mxu0 0
      %863 = vmatprep.subr.bf16.mxu0 0
      %864 = vmatpush2.bf16.msra.mxu0 0
      %865 = vmatprep.subr.bf16.mxu0 0
      %866 = vmatpush2.bf16.msra.mxu0 0
      %867 = vmatprep.subr.bf16.mxu0 0
      %868 = vmatpush2.bf16.msra.mxu0 0
      %869 = vmatprep.subr.bf16.mxu0 0
      %870 = vmatpush2.bf16.msra.mxu0 0
      %871 = vmatprep.subr.bf16.mxu0 0
      %872 = vmatpush2.bf16.msra.mxu0 0
      %873 = vmatprep.subr.bf16.mxu0 0
      %874 = vmatpush2.bf16.msra.mxu0 0
      %875 = vmatprep.mubr.bf16.mxu0 0
      %876 = vmatmul.mubr.bf16.gmra.mxu0 %v635
      %v877 = vpop.f32.mrf.mxu0
      %v878 = vadd.f32 %v717, %v877
      %v879 = vpop.f32.mrf.mxu0
      %v880 = vpop.f32.mrf.mxu0
      %v881 = vadd.f32 %v720, %v880
      %v882 = vpop.f32.mrf.mxu0
      %883 = vmatprep.mubr.bf16.mxu0 0
      %884 = vmatmul.mubr.bf16.gmra.mxu0 %v638
      %v885 = vpop.f32.mrf.mxu0
      %v886 = vadd.f32 %v725, %v885
      %v887 = vpop.f32.mrf.mxu0
      %v888 = vpop.f32.mrf.mxu0
      %v889 = vadd.f32 %v728, %v888
      %v890 = vpop.f32.mrf.mxu0
      %891 = vmatprep.mubr.bf16.mxu0 0
      %892 = vmatmul.mubr.bf16.gmra.mxu0 %v641
      %v893 = vpop.f32.mrf.mxu0
      %v894 = vadd.f32 %v733, %v893
      %v895 = vpop.f32.mrf.mxu0
      %v896 = vpop.f32.mrf.mxu0
      %v897 = vadd.f32 %v736, %v896
      %v898 = vpop.f32.mrf.mxu0
      %899 = vmatprep.mubr.bf16.mxu0 0
      %900 = vmatmul.mubr.bf16.gmra.mxu0 %v644
      %v901 = vpop.f32.mrf.mxu0
      %v902 = vadd.f32 %v741, %v901
      %v903 = vpop.f32.mrf.mxu0
      %v904 = vpop.f32.mrf.mxu0
      %v905 = vadd.f32 %v744, %v904
      %v906 = vpop.f32.mrf.mxu0
      %907 = vmatprep.mubr.bf16.mxu0 0
      %908 = vmatmul.mubr.bf16.gmra.mxu0 %v647
      %v909 = vpop.f32.mrf.mxu0
      %v910 = vadd.f32 %v749, %v909
      %v911 = vpop.f32.mrf.mxu0
      %v912 = vpop.f32.mrf.mxu0
      %v913 = vadd.f32 %v752, %v912
      %v914 = vpop.f32.mrf.mxu0
      %915 = vmatprep.mubr.bf16.mxu0 0
      %916 = vmatmul.mubr.bf16.gmra.mxu0 %v650
      %v917 = vpop.f32.mrf.mxu0
      %v918 = vadd.f32 %v757, %v917
      %v919 = vpop.f32.mrf.mxu0
      %v920 = vpop.f32.mrf.mxu0
      %v921 = vadd.f32 %v760, %v920
      %v922 = vpop.f32.mrf.mxu0
      %923 = vmatprep.mubr.bf16.mxu0 0
      %924 = vmatmul.mubr.bf16.gmra.mxu0 %v653
      %v925 = vpop.f32.mrf.mxu0
      %v926 = vadd.f32 %v765, %v925
      %v927 = vpop.f32.mrf.mxu0
      %v928 = vpop.f32.mrf.mxu0
      %v929 = vadd.f32 %v768, %v928
      %v930 = vpop.f32.mrf.mxu0
      %931 = vmatprep.mubr.bf16.mxu0 0
      %932 = vmatmul.mubr.bf16.gmra.mxu0 %v656
      %v933 = vpop.f32.mrf.mxu0
      %v934 = vadd.f32 %v773, %v933
      %v935 = vpop.f32.mrf.mxu0
      %v936 = vpop.f32.mrf.mxu0
      %v937 = vadd.f32 %v776, %v936
      %v938 = vpop.f32.mrf.mxu0
      %939 = vmatprep.mubr.bf16.mxu0 0
      %940 = vmatmul.mubr.bf16.gmra.mxu0 %v659
      %v941 = vpop.f32.mrf.mxu0
      %v942 = vadd.f32 %v781, %v941
      %v943 = vpop.f32.mrf.mxu0
      %v944 = vpop.f32.mrf.mxu0
      %v945 = vadd.f32 %v784, %v944
      %v946 = vpop.f32.mrf.mxu0
      %947 = vmatprep.mubr.bf16.mxu0 0
      %948 = vmatmul.mubr.bf16.gmra.mxu0 %v662
      %v949 = vpop.f32.mrf.mxu0
      %v950 = vadd.f32 %v789, %v949
      %v951 = vpop.f32.mrf.mxu0
      %v952 = vpop.f32.mrf.mxu0
      %v953 = vadd.f32 %v792, %v952
      %v954 = vpop.f32.mrf.mxu0
      %955 = vmatprep.mubr.bf16.mxu0 0
      %956 = vmatmul.mubr.bf16.gmra.mxu0 %v665
      %v957 = vpop.f32.mrf.mxu0
      %v958 = vadd.f32 %v797, %v957
      %v959 = vpop.f32.mrf.mxu0
      %v960 = vpop.f32.mrf.mxu0
      %v961 = vadd.f32 %v800, %v960
      %v962 = vpop.f32.mrf.mxu0
      %963 = vmatprep.mubr.bf16.mxu0 0
      %964 = vmatmul.mubr.bf16.gmra.mxu0 %v668
      %v965 = vpop.f32.mrf.mxu0
      %v966 = vadd.f32 %v805, %v965
      %v967 = vpop.f32.mrf.mxu0
      %v968 = vpop.f32.mrf.mxu0
      %v969 = vadd.f32 %v808, %v968
      %v970 = vpop.f32.mrf.mxu0
      %971 = vmatprep.mubr.bf16.mxu0 0
      %972 = vmatmul.mubr.bf16.gmra.mxu0 %v671
      %v973 = vpop.f32.mrf.mxu0
      %v974 = vadd.f32 %v813, %v973
      %v975 = vpop.f32.mrf.mxu0
      %v976 = vpop.f32.mrf.mxu0
      %v977 = vadd.f32 %v816, %v976
      %v978 = vpop.f32.mrf.mxu0
      %979 = vmatprep.mubr.bf16.mxu0 0
      %980 = vmatmul.mubr.bf16.gmra.mxu0 %v674
      %v981 = vpop.f32.mrf.mxu0
      %v982 = vadd.f32 %v821, %v981
      %v983 = vpop.f32.mrf.mxu0
      %v984 = vpop.f32.mrf.mxu0
      %v985 = vadd.f32 %v824, %v984
      %v986 = vpop.f32.mrf.mxu0
      %987 = vmatprep.mubr.bf16.mxu0 0
      %988 = vmatmul.mubr.bf16.gmra.mxu0 %v677
      %v989 = vpop.f32.mrf.mxu0
      %v990 = vadd.f32 %v829, %v989
      %v991 = vpop.f32.mrf.mxu0
      %v992 = vpop.f32.mrf.mxu0
      %v993 = vadd.f32 %v832, %v992
      %v994 = vpop.f32.mrf.mxu0
      %995 = vmatprep.mubr.bf16.mxu0 0
      %996 = vmatmul.mubr.bf16.gmra.mxu0 %v680
      %v997 = vpop.f32.mrf.mxu0
      %v998 = vadd.f32 %v837, %v997
      %v999 = vpop.f32.mrf.mxu0
      %v1000 = vpop.f32.mrf.mxu0
      %v1001 = vadd.f32 %v840, %v1000
      %v1002 = vpop.f32.mrf.mxu0
      %1003 = vdwg.mxu0
      %v1004 = vpack.c.bf16 %v881, %v878
      %v1005 = vpack.c.bf16 %v889, %v886
      %v1006 = vpack.c.bf16 %v897, %v894
      %v1007 = vpack.c.bf16 %v905, %v902
      %v1008 = vpack.c.bf16 %v913, %v910
      %v1009 = vpack.c.bf16 %v921, %v918
      %v1010 = vpack.c.bf16 %v929, %v926
      %v1011 = vpack.c.bf16 %v937, %v934
      %v1012 = vpack.c.bf16 %v945, %v942
      %v1013 = vpack.c.bf16 %v953, %v950
      %v1014 = vpack.c.bf16 %v961, %v958
      %v1015 = vpack.c.bf16 %v969, %v966
      %v1016 = vpack.c.bf16 %v977, %v974
      %v1017 = vpack.c.bf16 %v985, %v982
      %v1018 = vpack.c.bf16 %v993, %v990
      %v1019 = vpack.c.bf16 %v1001, %v998
      %v1036 = vunpack.c.l.b16 %v1004
      %v1037 = vunpack.c.h.b16 %v1004
      %v1038 = vunpack.c.l.b16 %v1005
      %v1039 = vunpack.c.h.b16 %v1005
      %v1040 = vunpack.c.l.b16 %v1006
      %v1041 = vunpack.c.h.b16 %v1006
      %v1042 = vunpack.c.l.b16 %v1007
      %v1043 = vunpack.c.h.b16 %v1007
      %v1044 = vunpack.c.l.b16 %v1008
      %v1045 = vunpack.c.h.b16 %v1008
      %v1046 = vunpack.c.l.b16 %v1009
      %v1047 = vunpack.c.h.b16 %v1009
      %v1048 = vunpack.c.l.b16 %v1010
      %v1049 = vunpack.c.h.b16 %v1010
      %v1050 = vunpack.c.l.b16 %v1011
      %v1051 = vunpack.c.h.b16 %v1011
      %v1052 = vunpack.c.l.b16 %v1012
      %v1053 = vunpack.c.h.b16 %v1012
      %v1054 = vunpack.c.l.b16 %v1013
      %v1055 = vunpack.c.h.b16 %v1013
      %v1056 = vunpack.c.l.b16 %v1014
      %v1057 = vunpack.c.h.b16 %v1014
      %v1058 = vunpack.c.l.b16 %v1015
      %v1059 = vunpack.c.h.b16 %v1015
      %v1060 = vunpack.c.l.b16 %v1016
      %v1061 = vunpack.c.h.b16 %v1016
      %v1062 = vunpack.c.l.b16 %v1017
      %v1063 = vunpack.c.h.b16 %v1017
      %v1064 = vunpack.c.l.b16 %v1018
      %v1065 = vunpack.c.h.b16 %v1018
      %v1066 = vunpack.c.l.b16 %v1019
      %v1067 = vunpack.c.h.b16 %v1019
      %v1068 = vpack.c.b16 %v1036, %v1036
      %v1069 = vpack.c.b16 %v1037, %v1037
      %v1070 = vpack.c.b16 %v1038, %v1038
      %v1071 = vpack.c.b16 %v1039, %v1039
      %v1072 = vpack.c.b16 %v1040, %v1040
      %v1073 = vpack.c.b16 %v1041, %v1041
      %v1074 = vpack.c.b16 %v1042, %v1042
      %v1075 = vpack.c.b16 %v1043, %v1043
      %v1076 = vpack.c.b16 %v1044, %v1044
      %v1077 = vpack.c.b16 %v1045, %v1045
      %v1078 = vpack.c.b16 %v1046, %v1046
      %v1079 = vpack.c.b16 %v1047, %v1047
      %v1080 = vpack.c.b16 %v1048, %v1048
      %v1081 = vpack.c.b16 %v1049, %v1049
      %v1082 = vpack.c.b16 %v1050, %v1050
      %v1083 = vpack.c.b16 %v1051, %v1051
      %v1084 = vpack.c.b16 %v1052, %v1052
      %v1085 = vpack.c.b16 %v1053, %v1053
      %v1086 = vpack.c.b16 %v1054, %v1054
      %v1087 = vpack.c.b16 %v1055, %v1055
      %v1088 = vpack.c.b16 %v1056, %v1056
      %v1089 = vpack.c.b16 %v1057, %v1057
      %v1090 = vpack.c.b16 %v1058, %v1058
      %v1091 = vpack.c.b16 %v1059, %v1059
      %v1092 = vpack.c.b16 %v1060, %v1060
      %v1093 = vpack.c.b16 %v1061, %v1061
      %v1094 = vpack.c.b16 %v1062, %v1062
      %v1095 = vpack.c.b16 %v1063, %v1063
      %v1096 = vpack.c.b16 %v1064, %v1064
      %v1097 = vpack.c.b16 %v1065, %v1065
      %v1098 = vpack.c.b16 %v1066, %v1066
      %v1099 = vpack.c.b16 %v1067, %v1067
      %vm1132 = vcmask 257024
      %1133 = vst.msk [vmem:[%s175] sm:$0xf] %vm1132, %v1068
      %1134 = vst.msk [vmem:[%s175 + $0x4] sm:$0xf] %vm1132, %v1069
      %1135 = vst.msk [vmem:[%s175 + $0x8] sm:$0xf] %vm1132, %v1070
      %1136 = vst.msk [vmem:[%s175 + $0xc] sm:$0xf] %vm1132, %v1071
      %1137 = vst.msk [vmem:[%s175 + $0x10] sm:$0xf] %vm1132, %v1072
      %1138 = vst.msk [vmem:[%s175 + $0x14] sm:$0xf] %vm1132, %v1073
      %1139 = vst.msk [vmem:[%s175 + $0x18] sm:$0xf] %vm1132, %v1074
      %1140 = vst.msk [vmem:[%s175 + $0x1c] sm:$0xf] %vm1132, %v1075
      %1141 = vst.msk [vmem:[%s175 + $0x20] sm:$0xf] %vm1132, %v1076
      %1142 = vst.msk [vmem:[%s175 + $0x24] sm:$0xf] %vm1132, %v1077
      %1143 = vst.msk [vmem:[%s175 + $0x28] sm:$0xf] %vm1132, %v1078
      %1144 = vst.msk [vmem:[%s175 + $0x2c] sm:$0xf] %vm1132, %v1079
      %1145 = vst.msk [vmem:[%s175 + $0x30] sm:$0xf] %vm1132, %v1080
      %1146 = vst.msk [vmem:[%s175 + $0x34] sm:$0xf] %vm1132, %v1081
      %1147 = vst.msk [vmem:[%s175 + $0x38] sm:$0xf] %vm1132, %v1082
      %1148 = vst.msk [vmem:[%s175 + $0x3c] sm:$0xf] %vm1132, %v1083
      %1149 = vst.msk [vmem:[%s175 + $0x40] sm:$0xf] %vm1132, %v1084
      %1150 = vst.msk [vmem:[%s175 + $0x44] sm:$0xf] %vm1132, %v1085
      %1151 = vst.msk [vmem:[%s175 + $0x48] sm:$0xf] %vm1132, %v1086
      %1152 = vst.msk [vmem:[%s175 + $0x4c] sm:$0xf] %vm1132, %v1087
      %1153 = vst.msk [vmem:[%s175 + $0x50] sm:$0xf] %vm1132, %v1088
      %1154 = vst.msk [vmem:[%s175 + $0x54] sm:$0xf] %vm1132, %v1089
      %1155 = vst.msk [vmem:[%s175 + $0x58] sm:$0xf] %vm1132, %v1090
      %1156 = vst.msk [vmem:[%s175 + $0x5c] sm:$0xf] %vm1132, %v1091
      %1157 = vst.msk [vmem:[%s175 + $0x60] sm:$0xf] %vm1132, %v1092
      %1158 = vst.msk [vmem:[%s175 + $0x64] sm:$0xf] %vm1132, %v1093
      %1159 = vst.msk [vmem:[%s175 + $0x68] sm:$0xf] %vm1132, %v1094
      %1160 = vst.msk [vmem:[%s175 + $0x6c] sm:$0xf] %vm1132, %v1095
      %1161 = vst.msk [vmem:[%s175 + $0x70] sm:$0xf] %vm1132, %v1096
      %1162 = vst.msk [vmem:[%s175 + $0x74] sm:$0xf] %vm1132, %v1097
      %1163 = vst.msk [vmem:[%s175 + $0x78] sm:$0xf] %vm1132, %v1098
      %1164 = vst.msk [vmem:[%s175 + $0x7c] sm:$0xf] %vm1132, %v1099
      %s1165 = smul.u32 32, %s14
      %p1166 = scmp.lt.s32.totalorder %s1165, 159
      %s1167 = scalar_select %p1166, %s1165, 159
      %s1168 = smul.addr %s1167, 4
      %s1169 = scalar_lea.vmem %s3, %s1168
      // Predicated region
      $region33: #{aggregation_forward.3} parent=31 // pred_check
        %p1170 = pneg %p100
      $region34: #{aggregation_forward.3} parent=31 // pred_check_branch
        %1172 = sbr.rel (%p1170) target = $region36
      $region35: #{aggregation_forward.3} parent=31 // pred_region
        %s1173 = smul.u32 32, %s14
      $region36: #{aggregation_forward.3} parent=31 // pred_fallthru
        _
    $region32: #{aggregation_forward.3} parent=5 // pred_fallthru
      _
    %p1174 = scmp.le.s32.totalorder 2, %s9
    // Predicated region
    $region37: #{aggregation_forward.3} parent=5 // pred_check
      %p1175 = pneg %p1174
    $region38: #{aggregation_forward.3} parent=5 // pred_check_branch
      %1177 = sbr.rel (%p1175) target = $region40
    $region39: #{aggregation_forward.3} parent=5 // pred_region
      %s1178 = ssub.s32 %s9, 2
      // Predicated region
      $region41: #{aggregation_forward.3} parent=39 // pred_check
        %p1179 = pneg %p106
      $region42: #{aggregation_forward.3} parent=39 // pred_check_branch
        %1181 = sbr.rel (%p1179) target = $region44
      $region43: #{aggregation_forward.3} parent=39 // pred_region
        %s1182 = smul.u32 32, %s15
        %p1183 = scmp.lt.s32.totalorder %s1182, 159
        %s1184 = scalar_select %p1183, %s1182, 159
        %s1185 = smul.addr %s1184, 4
        %s1186 = scalar_lea.vmem %s3, %s1185
      $region44: #{aggregation_forward.3} parent=39 // pred_fallthru
        _
    $region40: #{aggregation_forward.3} parent=5 // pred_fallthru
      _
  $region6: #{aggregation_forward.3} parent=0 // loop_footer
    %s13 = sadd.s32 1, %s9
  $region7: #{aggregation_forward.3} parent=0 // loop_footer_branch
    %8 = sbr.rel target = $region3
  $region8: #{aggregation_forward.3} parent=0 // loop_exit
    _

// kernel: aggregation_forward.4
$region0: #{aggregation_forward.4}
  #allocation0 [shape = 'u32[]', space=smem, size = 0x4, offset = 0x4, fixed_abs, tag = 'smem constant byte address 0x4 - core index']
  #allocation1 [shape = 'u32[144,128]{1,0:T(1,128)}', space=vmem, size = 0x12000, scoped, tag = 'internal scratch']
  %s0 = inlined_call_operand.vmem [shape: bf16[320,288], index: 0, kind: input, shape index: {}]
  %s1 = inlined_call_operand.vmem [shape: bf16[288,32], index: 1, kind: input, shape index: {}]
  %s2 = inlined_call_operand.vmem [shape: f32[1,32], index: 2, kind: input, shape index: {}]
  %s3 = inlined_call_operand.vmem [shape: bf16[320,32], index: 3, kind: output, shape index: {}]
  %s4 = sld [smem:[#allocation0]]
  $region45: #{aggregation_forward.4} parent=0
    _
  %s6 = ssub.s32 1, %s4
  %s7 = scalar_select 0, %s6, %s4
  loop: start=0, step=1, limit=4
  $region2: #{aggregation_forward.4} parent=0 // loop_pre_header
    _
  $region3: #{aggregation_forward.4} parent=0 // loop_header
    %s9 = sphi 0, %s13
    %p10 = scmp.ge.s32.totalorder %s9, 4
    %s19 = sphi 0, %s21
    %s22 = sphi 0, %s19
    %s23 = sphi 0, %s22
    %s39 = sphi 0, %s23
    %s43 = sphi 0, %s43
    %s45 = sphi 0, %s43
    %s46 = sphi 0, %s45
    %s60 = sphi 0, %s46
    %s64 = sphi 0, %s64
    %s66 = sphi 0, %s64
    %s67 = sphi 0, %s66
    %s81 = sphi 0, %s67
    %s87 = sphi 0, %s89
    %s90 = sphi 0, %s87
    %s91 = sphi 0, %s90
    %s107 = sphi 0, %s91
  $region4: #{aggregation_forward.4} parent=0 // loop_header_branch
    %12 = sbr.rel (%p10) target = $region8
  $region5: #{aggregation_forward.4} parent=0 // loop_body
    %s14 = ssub.s32 %s9, 1
    %s15 = ssub.s32 %s9, 2
    %s16 = sadd.s32 %s9, 1
    %s17 = ssub.s32 %s9, %s16
    %p18 = scmp.eq.s32.totalorder %s17, 0
    %s20 = sadd.s32 %s19, 1
    %s21 = scalar_select %p18, %s19, %s20
    %p24 = pneg %p18
    %p25 = scmp.eq.s32.totalorder %s9, 1
    %p26 = por %p24, %p25
    %p27 = scmp.ne.s32.totalorder %s19, %s22
    %p28 = scmp.eq.s32.totalorder %s9, 0
    %p29 = por %p27, %p28
    %p30 = scmp.ne.s32.totalorder %s19, %s22
    %p31 = scmp.eq.s32.totalorder %s14, 1
    %p32 = por %p30, %p31
    %p33 = scmp.ne.s32.totalorder %s22, %s23
    %p34 = scmp.eq.s32.totalorder %s14, 0
    %p35 = por %p33, %p34
    %p36 = scmp.ne.s32.totalorder %s22, %s23
    %p37 = scmp.eq.s32.totalorder %s15, 1
    %p38 = por %p36, %p37
    %p40 = scmp.ne.s32.totalorder %s23, %s39
    %p41 = scmp.eq.s32.totalorder %s15, 0
    %p42 = por %p40, %p41
    %s44 = sadd.s32 %s43, 1
    %p47 = scmp.eq.s32.totalorder %s9, 1
    %p48 = scmp.ne.s32.totalorder %s43, %s45
    %p49 = scmp.eq.s32.totalorder %s9, 0
    %p50 = por %p48, %p49
    %p51 = scmp.ne.s32.totalorder %s43, %s45
    %p52 = scmp.eq.s32.totalorder %s14, 1
    %p53 = por %p51, %p52
    %p54 = scmp.ne.s32.totalorder %s45, %s46
    %p55 = scmp.eq.s32.totalorder %s14, 0
    %p56 = por %p54, %p55
    %p57 = scmp.ne.s32.totalorder %s45, %s46
    %p58 = scmp.eq.s32.totalorder %s15, 1
    %p59 = por %p57, %p58
    %p61 = scmp.ne.s32.totalorder %s46, %s60
    %p62 = scmp.eq.s32.totalorder %s15, 0
    %p63 = por %p61, %p62
    %s65 = sadd.s32 %s64, 1
    %p68 = scmp.eq.s32.totalorder %s9, 1
    %p69 = scmp.ne.s32.totalorder %s64, %s66
    %p70 = scmp.eq.s32.totalorder %s9, 0
    %p71 = por %p69, %p70
    %p72 = scmp.ne.s32.totalorder %s64, %s66
    %p73 = scmp.eq.s32.totalorder %s14, 1
    %p74 = por %p72, %p73
    %p75 = scmp.ne.s32.totalorder %s66, %s67
    %p76 = scmp.eq.s32.totalorder %s14, 0
    %p77 = por %p75, %p76
    %p78 = scmp.ne.s32.totalorder %s66, %s67
    %p79 = scmp.eq.s32.totalorder %s15, 1
    %p80 = por %p78, %p79
    %p82 = scmp.ne.s32.totalorder %s67, %s81
    %p83 = scmp.eq.s32.totalorder %s15, 0
    %p84 = por %p82, %p83
    %s85 = ssub.s32 %s9, %s16
    %p86 = scmp.eq.s32.totalorder %s85, 0
    %s88 = sadd.s32 %s87, 1
    %s89 = scalar_select %p86, %s87, %s88
    %p92 = pneg %p86
    %p93 = scmp.eq.s32.totalorder %s9, 1
    %p94 = por %p92, %p93
    %p95 = scmp.ne.s32.totalorder %s87, %s90
    %p96 = scmp.eq.s32.totalorder %s9, 0
    %p97 = por %p95, %p96
    %p98 = scmp.ne.s32.totalorder %s87, %s90
    %p99 = scmp.eq.s32.totalorder %s14, 1
    %p100 = por %p98, %p99
    %p101 = scmp.ne.s32.totalorder %s90, %s91
    %p102 = scmp.eq.s32.totalorder %s14, 0
    %p103 = por %p101, %p102
    %p104 = scmp.ne.s32.totalorder %s90, %s91
    %p105 = scmp.eq.s32.totalorder %s15, 1
    %p106 = por %p104, %p105
    %p108 = scmp.ne.s32.totalorder %s91, %s107
    %p109 = scmp.eq.s32.totalorder %s15, 0
    %p110 = por %p108, %p109
    %p111 = scmp.le.s32.totalorder 1, %s9
    %p112 = scmp.lt.s32.totalorder %s9, 3
    %p113 = pnand %p111, %p112
    %p114 = pneg %p113
    // Predicated region
    $region9: #{aggregation_forward.4} parent=5 // pred_check
      _
    $region10: #{aggregation_forward.4} parent=5 // pred_check_branch
      %116 = sbr.rel (%p113) target = $region12
    $region11: #{aggregation_forward.4} parent=5 // pred_region
      %s117 = ssub.s32 %s9, 1
      // Predicated region
      $region13: #{aggregation_forward.4} parent=11 // pred_check
        %p118 = pneg %p56
      $region14: #{aggregation_forward.4} parent=11 // pred_check_branch
        %120 = sbr.rel (%p118) target = $region16
      $region15: #{aggregation_forward.4} parent=11 // pred_region
        _
      $region16: #{aggregation_forward.4} parent=11 // pred_fallthru
        _
      // Predicated region
      $region17: #{aggregation_forward.4} parent=11 // pred_check
        %p121 = pneg %p77
      $region18: #{aggregation_forward.4} parent=11 // pred_check_branch
        %123 = sbr.rel (%p121) target = $region20
      $region19: #{aggregation_forward.4} parent=11 // pred_region
        _
      $region20: #{aggregation_forward.4} parent=11 // pred_fallthru
        _
    $region12: #{aggregation_forward.4} parent=5 // pred_fallthru
      _
    %p124 = scmp.lt.s32.totalorder %s9, 2
    // Predicated region
    $region21: #{aggregation_forward.4} parent=5 // pred_check
      %p125 = pneg %p124
    $region22: #{aggregation_forward.4} parent=5 // pred_check_branch
      %127 = sbr.rel (%p125) target = $region24
    $region23: #{aggregation_forward.4} parent=5 // pred_region
      // Predicated region
      $region25: #{aggregation_forward.4} parent=23 // pred_check
        %p128 = pneg %p29
      $region26: #{aggregation_forward.4} parent=23 // pred_check_branch
        %130 = sbr.rel (%p128) target = $region28
      $region27: #{aggregation_forward.4} parent=23 // pred_region
        %s131 = smul.u32 20, %s9
        %p132 = scmp.lt.s32.totalorder %s131, 39
        %s133 = scalar_select %p132, %s131, 39
        %s134 = smul.addr %s133, 3
        %s135 = smul.addr %s134, 4
        %s136 = scalar_lea.vmem %s0, %s135
        %s137 = smul.u32 20, %s9
      $region28: #{aggregation_forward.4} parent=23 // pred_fallthru
        _
    $region24: #{aggregation_forward.4} parent=5 // pred_fallthru
      _
    %p138 = scmp.le.s32.totalorder 1, %s9
    %p139 = scmp.lt.s32.totalorder %s9, 3
    %p140 = pnand %p138, %p139
    %p141 = pneg %p140
    // Predicated region
    $region29: #{aggregation_forward.4} parent=5 // pred_check
      _
    $region30: #{aggregation_forward.4} parent=5 // pred_check_branch
      %143 = sbr.rel (%p140) target = $region32
    $region31: #{aggregation_forward.4} parent=5 // pred_region
      %s144 = ssub.s32 %s9, 1
      %s145 = smul.u32 20, %s14
      %p146 = scmp.lt.s32.totalorder %s145, 39
      %s147 = scalar_select %p146, %s145, 39
      %s148 = smul.addr %s147, 3
      %s149 = smul.addr %s148, 4
      %s150 = scalar_lea.vmem %s0, %s149
      %p151 = pneg %p35
      %p152 = pneg %p32
      %p153 = pneg %p56
      %p154 = pneg %p53
      %p155 = pneg %p77
      %p156 = pneg %p74
      %p157 = pneg %p103
      %p158 = pneg %p100
      %s159 = smul.u32 20, %s14
      %p160 = scmp.lt.s32.totalorder %s159, 39
      %s161 = scalar_select %p160, %s159, 39
      %s162 = smul.addr %s161, 4
      %s163 = scalar_lea.vmem %s3, %s162
      %s164 = smul.u32 20, %s14
      %p165 = scmp.lt.s32.totalorder %s164, 39
      %s166 = scalar_select %p165, %s164, 39
      %s167 = smul.addr %s166, 3
      %s168 = smul.addr %s167, 4
      %s169 = scalar_lea.vmem %s0, %s168
      %s170 = smul.u32 20, %s14
      %s171 = smul.u32 20, %s14
      %p172 = scmp.lt.s32.totalorder %s171, 39
      %s173 = scalar_select %p172, %s171, 39
      %s174 = smul.addr %s173, 4
      %s175 = scalar_lea.vmem %s3, %s174
      %s176 = smul.u32 20, %s14
      %v178 = vld [vmem:[%s169] sm:$0xff]
      %v179 = vld [vmem:[%s169 + $0x8] sm:$0xf]
      %v180 = vld [vmem:[%s169 + $0xc] sm:$0xff]
      %v181 = vld [vmem:[%s169 + $0x14] sm:$0xf]
      %v182 = vld [vmem:[%s169 + $0x18] sm:$0xff]
      %v183 = vld [vmem:[%s169 + $0x20] sm:$0xf]
      %v184 = vld [vmem:[%s169 + $0x24] sm:$0xff]
      %v185 = vld [vmem:[%s169 + $0x2c] sm:$0xf]
      %v186 = vld [vmem:[%s169 + $0x30] sm:$0xff]
      %v187 = vld [vmem:[%s169 + $0x38] sm:$0xf]
      %v188 = vld [vmem:[%s169 + $0x3c] sm:$0xff]
      %v189 = vld [vmem:[%s169 + $0x44] sm:$0xf]
      %v190 = vld [vmem:[%s169 + $0x48] sm:$0xff]
      %v191 = vld [vmem:[%s169 + $0x50] sm:$0xf]
      %v192 = vld [vmem:[%s169 + $0x54] sm:$0xff]
      %v193 = vld [vmem:[%s169 + $0x5c] sm:$0xf]
      %v194 = vld [vmem:[%s169 + $0x60] sm:$0xff]
      %v195 = vld [vmem:[%s169 + $0x68] sm:$0xf]
      %v196 = vld [vmem:[%s169 + $0x6c] sm:$0xff]
      %v197 = vld [vmem:[%s169 + $0x74] sm:$0xf]
      %v198 = vld [vmem:[%s169 + $0x78] sm:$0xff]
      %v199 = vld [vmem:[%s169 + $0x80] sm:$0xf]
      %v200 = vld [vmem:[%s169 + $0x84] sm:$0xff]
      %v201 = vld [vmem:[%s169 + $0x8c] sm:$0xf]
      %v202 = vld [vmem:[%s169 + $0x90] sm:$0xff]
      %v203 = vld [vmem:[%s169 + $0x98] sm:$0xf]
      %v204 = vld [vmem:[%s169 + $0x9c] sm:$0xff]
      %v205 = vld [vmem:[%s169 + $0xa4] sm:$0xf]
      %v206 = vld [vmem:[%s169 + $0xa8] sm:$0xff]
      %v207 = vld [vmem:[%s169 + $0xb0] sm:$0xf]
      %v208 = vld [vmem:[%s169 + $0xb4] sm:$0xff]
      %v209 = vld [vmem:[%s169 + $0xbc] sm:$0xf]
      %v210 = vld [vmem:[%s169 + $0xc0] sm:$0xff]
      %v211 = vld [vmem:[%s169 + $0xc8] sm:$0xf]
      %v212 = vld [vmem:[%s169 + $0xcc] sm:$0xff]
      %v213 = vld [vmem:[%s169 + $0xd4] sm:$0xf]
      %v214 = vld [vmem:[%s169 + $0xd8] sm:$0xff]
      %v215 = vld [vmem:[%s169 + $0xe0] sm:$0xf]
      %v216 = vld [vmem:[%s169 + $0xe4] sm:$0xff]
      %v217 = vld [vmem:[%s169 + $0xec] sm:$0xf]
      %v218 = vld [vmem:[%s1] sm:$0xf]
      %v219 = vld [vmem:[%s1 + $0x4] sm:$0xf]
      %v220 = vld [vmem:[%s1 + $0x8] sm:$0xf]
      %v221 = vld [vmem:[%s1 + $0xc] sm:$0xf]
      %v222 = vld [vmem:[%s1 + $0x10] sm:$0xf]
      %v223 = vld [vmem:[%s1 + $0x14] sm:$0xf]
      %v224 = vld [vmem:[%s1 + $0x18] sm:$0xf]
      %v225 = vld [vmem:[%s1 + $0x1c] sm:$0xf]
      %v226 = vld [vmem:[%s1 + $0x20] sm:$0xf]
      %v227 = vld [vmem:[%s1 + $0x24] sm:$0xf]
      %v228 = vld [vmem:[%s1 + $0x28] sm:$0xf]
      %v229 = vld [vmem:[%s1 + $0x2c] sm:$0xf]
      %v230 = vld [vmem:[%s1 + $0x30] sm:$0xf]
      %v231 = vld [vmem:[%s1 + $0x34] sm:$0xf]
      %v232 = vld [vmem:[%s1 + $0x38] sm:$0xf]
      %v233 = vld [vmem:[%s1 + $0x3c] sm:$0xf]
      %v234 = vld [vmem:[%s1 + $0x40] sm:$0xf]
      %v235 = vld [vmem:[%s1 + $0x44] sm:$0xf]
      %v236 = vld [vmem:[%s1 + $0x48] sm:$0xf]
      %v237 = vld [vmem:[%s1 + $0x4c] sm:$0xf]
      %v238 = vld [vmem:[%s1 + $0x50] sm:$0xf]
      %v239 = vld [vmem:[%s1 + $0x54] sm:$0xf]
      %v240 = vld [vmem:[%s1 + $0x58] sm:$0xf]
      %v241 = vld [vmem:[%s1 + $0x5c] sm:$0xf]
      %v242 = vld [vmem:[%s1 + $0x60] sm:$0xf]
      %v243 = vld [vmem:[%s1 + $0x64] sm:$0xf]
      %v244 = vld [vmem:[%s1 + $0x68] sm:$0xf]
      %v245 = vld [vmem:[%s1 + $0x6c] sm:$0xf]
      %v246 = vld [vmem:[%s1 + $0x70] sm:$0xf]
      %v247 = vld [vmem:[%s1 + $0x74] sm:$0xf]
      %v248 = vld [vmem:[%s1 + $0x78] sm:$0xf]
      %v249 = vld [vmem:[%s1 + $0x7c] sm:$0xf]
      %v250 = vld [vmem:[%s1 + $0x80] sm:$0xf]
      %v251 = vld [vmem:[%s1 + $0x84] sm:$0xf]
      %v252 = vld [vmem:[%s1 + $0x88] sm:$0xf]
      %v253 = vld [vmem:[%s1 + $0x8c] sm:$0xf]
      %v254 = vld [vmem:[%s2] sm:$0x1]
      %v256 = vlaneseq
      %v257 = vshrl.u32 %v256, 7
      %v258 = vsub.s32 0, %v257
      %v259 = vrot.slane %v254, %v258
      %v301 = vunpack.c.l.b16 %v178
      %v302 = vunpack.c.h.b16 %v178
      %v303 = vunpack.c.l.b16 %v179
      %v304 = vunpack.c.l.b16 %v180
      %v305 = vunpack.c.h.b16 %v180
      %v306 = vunpack.c.l.b16 %v181
      %v307 = vunpack.c.l.b16 %v182
      %v308 = vunpack.c.h.b16 %v182
      %v309 = vunpack.c.l.b16 %v183
      %v310 = vunpack.c.l.b16 %v184
      %v311 = vunpack.c.h.b16 %v184
      %v312 = vunpack.c.l.b16 %v185
      %v313 = vunpack.c.l.b16 %v186
      %v314 = vunpack.c.h.b16 %v186
      %v315 = vunpack.c.l.b16 %v187
      %v316 = vunpack.c.l.b16 %v188
      %v317 = vunpack.c.h.b16 %v188
      %v318 = vunpack.c.l.b16 %v189
      %v319 = vunpack.c.l.b16 %v190
      %v320 = vunpack.c.h.b16 %v190
      %v321 = vunpack.c.l.b16 %v191
      %v322 = vunpack.c.l.b16 %v192
      %v323 = vunpack.c.h.b16 %v192
      %v324 = vunpack.c.l.b16 %v193
      %v325 = vunpack.c.l.b16 %v194
      %v326 = vunpack.c.h.b16 %v194
      %v327 = vunpack.c.l.b16 %v195
      %v328 = vunpack.c.l.b16 %v196
      %v329 = vunpack.c.h.b16 %v196
      %v330 = vunpack.c.l.b16 %v197
      %v331 = vunpack.c.l.b16 %v198
      %v332 = vunpack.c.h.b16 %v198
      %v333 = vunpack.c.l.b16 %v199
      %v334 = vunpack.c.l.b16 %v200
      %v335 = vunpack.c.h.b16 %v200
      %v336 = vunpack.c.l.b16 %v201
      %v337 = vunpack.c.l.b16 %v202
      %v338 = vunpack.c.h.b16 %v202
      %v339 = vunpack.c.l.b16 %v203
      %v340 = vunpack.c.l.b16 %v204
      %v341 = vunpack.c.h.b16 %v204
      %v342 = vunpack.c.l.b16 %v205
      %v343 = vunpack.c.l.b16 %v206
      %v344 = vunpack.c.h.b16 %v206
      %v345 = vunpack.c.l.b16 %v207
      %v346 = vunpack.c.l.b16 %v208
      %v347 = vunpack.c.h.b16 %v208
      %v348 = vunpack.c.l.b16 %v209
      %v349 = vunpack.c.l.b16 %v210
      %v350 = vunpack.c.h.b16 %v210
      %v351 = vunpack.c.l.b16 %v211
      %v352 = vunpack.c.l.b16 %v212
      %v353 = vunpack.c.h.b16 %v212
      %v354 = vunpack.c.l.b16 %v213
      %v355 = vunpack.c.l.b16 %v214
      %v356 = vunpack.c.h.b16 %v214
      %v357 = vunpack.c.l.b16 %v215
      %v358 = vunpack.c.l.b16 %v216
      %v359 = vunpack.c.h.b16 %v216
      %v360 = vunpack.c.l.b16 %v217
      %v361 = vpack.c.b16 %v304, %v301
      %v362 = vpack.c.b16 %v305, %v302
      %v363 = vpack.c.b16 %v306, %v303
      %v364 = vpack.c.b16 %v310, %v307
      %v365 = vpack.c.b16 %v311, %v308
      %v366 = vpack.c.b16 %v312, %v309
      %v367 = vpack.c.b16 %v316, %v313
      %v368 = vpack.c.b16 %v317, %v314
      %v369 = vpack.c.b16 %v318, %v315
      %v370 = vpack.c.b16 %v322, %v319
      %v371 = vpack.c.b16 %v323, %v320
      %v372 = vpack.c.b16 %v324, %v321
      %v373 = vpack.c.b16 %v328, %v325
      %v374 = vpack.c.b16 %v329, %v326
      %v375 = vpack.c.b16 %v330, %v327
      %v376 = vpack.c.b16 %v334, %v331
      %v377 = vpack.c.b16 %v335, %v332
      %v378 = vpack.c.b16 %v336, %v333
      %v379 = vpack.c.b16 %v340, %v337
      %v380 = vpack.c.b16 %v341, %v338
      %v381 = vpack.c.b16 %v342, %v339
      %v382 = vpack.c.b16 %v346, %v343
      %v383 = vpack.c.b16 %v347, %v344
      %v384 = vpack.c.b16 %v348, %v345
      %v385 = vpack.c.b16 %v352, %v349
      %v386 = vpack.c.b16 %v353, %v350
      %v387 = vpack.c.b16 %v354, %v351
      %v388 = vpack.c.b16 %v358, %v355
      %v389 = vpack.c.b16 %v359, %v356
      %v390 = vpack.c.b16 %v360, %v357
      %v447 = vunpack.c.l.b16 %v218
      %v448 = vunpack.c.l.b16 %v219
      %v449 = vunpack.c.l.b16 %v220
      %v450 = vunpack.c.l.b16 %v221
      %v451 = vunpack.c.l.b16 %v222
      %v452 = vunpack.c.l.b16 %v223
      %v453 = vunpack.c.l.b16 %v224
      %v454 = vunpack.c.l.b16 %v225
      %v455 = vunpack.c.l.b16 %v226
      %v456 = vunpack.c.l.b16 %v227
      %v457 = vunpack.c.l.b16 %v228
      %v458 = vunpack.c.l.b16 %v229
      %v459 = vunpack.c.l.b16 %v230
      %v460 = vunpack.c.l.b16 %v231
      %v461 = vunpack.c.l.b16 %v232
      %v462 = vunpack.c.l.b16 %v233
      %v463 = vunpack.c.l.b16 %v234
      %v464 = vunpack.c.l.b16 %v235
      %v465 = vunpack.c.l.b16 %v236
      %v466 = vunpack.c.l.b16 %v237
      %v467 = vunpack.c.l.b16 %v238
      %v468 = vunpack.c.l.b16 %v239
      %v469 = vunpack.c.l.b16 %v240
      %v470 = vunpack.c.l.b16 %v241
      %v471 = vunpack.c.l.b16 %v242
      %v472 = vunpack.c.l.b16 %v243
      %v473 = vunpack.c.l.b16 %v244
      %v474 = vunpack.c.l.b16 %v245
      %v475 = vunpack.c.l.b16 %v246
      %v476 = vunpack.c.l.b16 %v247
      %v477 = vunpack.c.l.b16 %v248
      %v478 = vunpack.c.l.b16 %v249
      %v479 = vunpack.c.l.b16 %v250
      %v480 = vunpack.c.l.b16 %v251
      %v481 = vunpack.c.l.b16 %v252
      %v482 = vunpack.c.l.b16 %v253
      %v483 = vpack.c.b16 %v448, %v447
      %v484 = vpack.c.b16 %v450, %v449
      %v485 = vpack.c.b16 %v452, %v451
      %v486 = vpack.c.b16 %v454, %v453
      %v487 = vpack.c.b16 %v456, %v455
      %v488 = vpack.c.b16 %v458, %v457
      %v489 = vpack.c.b16 %v460, %v459
      %v490 = vpack.c.b16 %v462, %v461
      %v491 = vpack.c.b16 %v464, %v463
      %v492 = vpack.c.b16 %v466, %v465
      %v493 = vpack.c.b16 %v468, %v467
      %v494 = vpack.c.b16 %v470, %v469
      %v495 = vpack.c.b16 %v472, %v471
      %v496 = vpack.c.b16 %v474, %v473
      %v497 = vpack.c.b16 %v476, %v475
      %v498 = vpack.c.b16 %v478, %v477
      %v499 = vpack.c.b16 %v480, %v479
      %v500 = vpack.c.b16 %v482, %v481
      %vm519 = vcmask 261120
      %v521 = vsel %vm519, %v363, 0
      %v524 = vsel %vm519, %v366, 0
      %v527 = vsel %vm519, %v369, 0
      %v530 = vsel %vm519, %v372, 0
      %v533 = vsel %vm519, %v375, 0
      %v536 = vsel %vm519, %v378, 0
      %v539 = vsel %vm519, %v381, 0
      %v542 = vsel %vm519, %v384, 0
      %v545 = vsel %vm519, %v387, 0
      %v548 = vsel %vm519, %v390, 0
      %550 = vmatprep.subr.bf16.mxu0 0
      %551 = vmatpush1.bf16.msra.mxu0 %v490
      %552 = vmatprep.subr.bf16.mxu0 0
      %553 = vmatpush1.bf16.msra.mxu0 %v489
      %554 = vmatprep.subr.bf16.mxu0 0
      %555 = vmatpush1.bf16.msra.mxu0 %v488
      %556 = vmatprep.subr.bf16.mxu0 0
      %557 = vmatpush1.bf16.msra.mxu0 %v487
      %558 = vmatprep.subr.bf16.mxu0 0
      %559 = vmatpush1.bf16.msra.mxu0 %v486
      %560 = vmatprep.subr.bf16.mxu0 0
      %561 = vmatpush1.bf16.msra.mxu0 %v485
      %562 = vmatprep.subr.bf16.mxu0 0
      %563 = vmatpush1.bf16.msra.mxu0 %v484
      %564 = vmatprep.subr.bf16.mxu0 0
      %565 = vmatpush1.bf16.msra.mxu0 %v483
      %566 = vmatprep.subr.bf16.mxu0 0
      %567 = vmatpush2.bf16.msra.mxu0 %v498
      %568 = vmatprep.subr.bf16.mxu0 0
      %569 = vmatpush2.bf16.msra.mxu0 %v497
      %570 = vmatprep.subr.bf16.mxu0 0
      %571 = vmatpush2.bf16.msra.mxu0 %v496
      %572 = vmatprep.subr.bf16.mxu0 0
      %573 = vmatpush2.bf16.msra.mxu0 %v495
      %574 = vmatprep.subr.bf16.mxu0 0
      %575 = vmatpush2.bf16.msra.mxu0 %v494
      %576 = vmatprep.subr.bf16.mxu0 0
      %577 = vmatpush2.bf16.msra.mxu0 %v493
      %578 = vmatprep.subr.bf16.mxu0 0
      %579 = vmatpush2.bf16.msra.mxu0 %v492
      %580 = vmatprep.subr.bf16.mxu0 0
      %581 = vmatpush2.bf16.msra.mxu0 %v491
      %582 = vmatprep.mubr.bf16.mxu0 %v362
      %583 = vmatmul.mubr.bf16.gmra.mxu0 %v361
      %v584 = vpop.f32.mrf.mxu0
      %v585 = vadd.f32 %v259, %v584
      %v586 = vpop.f32.mrf.mxu0
      %v587 = vpop.f32.mrf.mxu0
      %v588 = vadd.f32 %v259, %v587
      %v589 = vpop.f32.mrf.mxu0
      %590 = vmatprep.mubr.bf16.mxu0 %v365
      %591 = vmatmul.mubr.bf16.gmra.mxu0 %v364
      %v592 = vpop.f32.mrf.mxu0
      %v593 = vadd.f32 %v259, %v592
      %v594 = vpop.f32.mrf.mxu0
      %v595 = vpop.f32.mrf.mxu0
      %v596 = vadd.f32 %v259, %v595
      %v597 = vpop.f32.mrf.mxu0
      %598 = vmatprep.mubr.bf16.mxu0 %v368
      %599 = vmatmul.mubr.bf16.gmra.mxu0 %v367
      %v600 = vpop.f32.mrf.mxu0
      %v601 = vadd.f32 %v259, %v600
      %v602 = vpop.f32.mrf.mxu0
      %v603 = vpop.f32.mrf.mxu0
      %v604 = vadd.f32 %v259, %v603
      %v605 = vpop.f32.mrf.mxu0
      %606 = vmatprep.mubr.bf16.mxu0 %v371
      %607 = vmatmul.mubr.bf16.gmra.mxu0 %v370
      %v608 = vpop.f32.mrf.mxu0
      %v609 = vadd.f32 %v259, %v608
      %v610 = vpop.f32.mrf.mxu0
      %v611 = vpop.f32.mrf.mxu0
      %v612 = vadd.f32 %v259, %v611
      %v613 = vpop.f32.mrf.mxu0
      %614 = vmatprep.mubr.bf16.mxu0 %v374
      %615 = vmatmul.mubr.bf16.gmra.mxu0 %v373
      %v616 = vpop.f32.mrf.mxu0
      %v617 = vadd.f32 %v259, %v616
      %v618 = vpop.f32.mrf.mxu0
      %v619 = vpop.f32.mrf.mxu0
      %v620 = vadd.f32 %v259, %v619
      %v621 = vpop.f32.mrf.mxu0
      %622 = vmatprep.mubr.bf16.mxu0 %v377
      %623 = vmatmul.mubr.bf16.gmra.mxu0 %v376
      %v624 = vpop.f32.mrf.mxu0
      %v625 = vadd.f32 %v259, %v624
      %v626 = vpop.f32.mrf.mxu0
      %v627 = vpop.f32.mrf.mxu0
      %v628 = vadd.f32 %v259, %v627
      %v629 = vpop.f32.mrf.mxu0
      %630 = vmatprep.mubr.bf16.mxu0 %v380
      %631 = vmatmul.mubr.bf16.gmra.mxu0 %v379
      %v632 = vpop.f32.mrf.mxu0
      %v633 = vadd.f32 %v259, %v632
      %v634 = vpop.f32.mrf.mxu0
      %v635 = vpop.f32.mrf.mxu0
      %v636 = vadd.f32 %v259, %v635
      %v637 = vpop.f32.mrf.mxu0
      %638 = vmatprep.mubr.bf16.mxu0 %v383
      %639 = vmatmul.mubr.bf16.gmra.mxu0 %v382
      %v640 = vpop.f32.mrf.mxu0
      %v641 = vadd.f32 %v259, %v640
      %v642 = vpop.f32.mrf.mxu0
      %v643 = vpop.f32.mrf.mxu0
      %v644 = vadd.f32 %v259, %v643
      %v645 = vpop.f32.mrf.mxu0
      %646 = vmatprep.mubr.bf16.mxu0 %v386
      %647 = vmatmul.mubr.bf16.gmra.mxu0 %v385
      %v648 = vpop.f32.mrf.mxu0
      %v649 = vadd.f32 %v259, %v648
      %v650 = vpop.f32.mrf.mxu0
      %v651 = vpop.f32.mrf.mxu0
      %v652 = vadd.f32 %v259, %v651
      %v653 = vpop.f32.mrf.mxu0
      %654 = vmatprep.mubr.bf16.mxu0 %v389
      %655 = vmatmul.mubr.bf16.gmra.mxu0 %v388
      %v656 = vpop.f32.mrf.mxu0
      %v657 = vadd.f32 %v259, %v656
      %v658 = vpop.f32.mrf.mxu0
      %v659 = vpop.f32.mrf.mxu0
      %v660 = vadd.f32 %v259, %v659
      %v661 = vpop.f32.mrf.mxu0
      %662 = vdwg.mxu0
      %663 = vmatprep.subr.bf16.mxu0 0
      %664 = vmatpush1.bf16.msra.mxu0 0
      %665 = vmatprep.subr.bf16.mxu0 0
      %666 = vmatpush1.bf16.msra.mxu0 0
      %667 = vmatprep.subr.bf16.mxu0 0
      %668 = vmatpush1.bf16.msra.mxu0 0
      %669 = vmatprep.subr.bf16.mxu0 0
      %670 = vmatpush1.bf16.msra.mxu0 0
      %671 = vmatprep.subr.bf16.mxu0 0
      %672 = vmatpush1.bf16.msra.mxu0 0
      %673 = vmatprep.subr.bf16.mxu0 0
      %674 = vmatpush1.bf16.msra.mxu0 0
      %675 = vmatprep.subr.bf16.mxu0 0
      %676 = vmatpush1.bf16.msra.mxu0 %v500
      %677 = vmatprep.subr.bf16.mxu0 0
      %678 = vmatpush1.bf16.msra.mxu0 %v499
      %679 = vmatprep.subr.bf16.mxu0 0
      %680 = vmatpush2.bf16.msra.mxu0 0
      %681 = vmatprep.subr.bf16.mxu0 0
      %682 = vmatpush2.bf16.msra.mxu0 0
      %683 = vmatprep.subr.bf16.mxu0 0
      %684 = vmatpush2.bf16.msra.mxu0 0
      %685 = vmatprep.subr.bf16.mxu0 0
      %686 = vmatpush2.bf16.msra.mxu0 0
      %687 = vmatprep.subr.bf16.mxu0 0
      %688 = vmatpush2.bf16.msra.mxu0 0
      %689 = vmatprep.subr.bf16.mxu0 0
      %690 = vmatpush2.bf16.msra.mxu0 0
      %691 = vmatprep.subr.bf16.mxu0 0
      %692 = vmatpush2.bf16.msra.mxu0 0
      %693 = vmatprep.subr.bf16.mxu0 0
      %694 = vmatpush2.bf16.msra.mxu0 0
      %695 = vmatprep.mubr.bf16.mxu0 0
      %696 = vmatmul.mubr.bf16.gmra.mxu0 %v521
      %v697 = vpop.f32.mrf.mxu0
      %v698 = vadd.f32 %v585, %v697
      %v699 = vpop.f32.mrf.mxu0
      %v700 = vpop.f32.mrf.mxu0
      %v701 = vadd.f32 %v588, %v700
      %v702 = vpop.f32.mrf.mxu0
      %703 = vmatprep.mubr.bf16.mxu0 0
      %704 = vmatmul.mubr.bf16.gmra.mxu0 %v524
      %v705 = vpop.f32.mrf.mxu0
      %v706 = vadd.f32 %v593, %v705
      %v707 = vpop.f32.mrf.mxu0
      %v708 = vpop.f32.mrf.mxu0
      %v709 = vadd.f32 %v596, %v708
      %v710 = vpop.f32.mrf.mxu0
      %711 = vmatprep.mubr.bf16.mxu0 0
      %712 = vmatmul.mubr.bf16.gmra.mxu0 %v527
      %v713 = vpop.f32.mrf.mxu0
      %v714 = vadd.f32 %v601, %v713
      %v715 = vpop.f32.mrf.mxu0
      %v716 = vpop.f32.mrf.mxu0
      %v717 = vadd.f32 %v604, %v716
      %v718 = vpop.f32.mrf.mxu0
      %719 = vmatprep.mubr.bf16.mxu0 0
      %720 = vmatmul.mubr.bf16.gmra.mxu0 %v530
      %v721 = vpop.f32.mrf.mxu0
      %v722 = vadd.f32 %v609, %v721
      %v723 = vpop.f32.mrf.mxu0
      %v724 = vpop.f32.mrf.mxu0
      %v725 = vadd.f32 %v612, %v724
      %v726 = vpop.f32.mrf.mxu0
      %727 = vmatprep.mubr.bf16.mxu0 0
      %728 = vmatmul.mubr.bf16.gmra.mxu0 %v533
      %v729 = vpop.f32.mrf.mxu0
      %v730 = vadd.f32 %v617, %v729
      %v731 = vpop.f32.mrf.mxu0
      %v732 = vpop.f32.mrf.mxu0
      %v733 = vadd.f32 %v620, %v732
      %v734 = vpop.f32.mrf.mxu0
      %735 = vmatprep.mubr.bf16.mxu0 0
      %736 = vmatmul.mubr.bf16.gmra.mxu0 %v536
      %v737 = vpop.f32.mrf.mxu0
      %v738 = vadd.f32 %v625, %v737
      %v739 = vpop.f32.mrf.mxu0
      %v740 = vpop.f32.mrf.mxu0
      %v741 = vadd.f32 %v628, %v740
      %v742 = vpop.f32.mrf.mxu0
      %743 = vmatprep.mubr.bf16.mxu0 0
      %744 = vmatmul.mubr.bf16.gmra.mxu0 %v539
      %v745 = vpop.f32.mrf.mxu0
      %v746 = vadd.f32 %v633, %v745
      %v747 = vpop.f32.mrf.mxu0
      %v748 = vpop.f32.mrf.mxu0
      %v749 = vadd.f32 %v636, %v748
      %v750 = vpop.f32.mrf.mxu0
      %751 = vmatprep.mubr.bf16.mxu0 0
      %752 = vmatmul.mubr.bf16.gmra.mxu0 %v542
      %v753 = vpop.f32.mrf.mxu0
      %v754 = vadd.f32 %v641, %v753
      %v755 = vpop.f32.mrf.mxu0
      %v756 = vpop.f32.mrf.mxu0
      %v757 = vadd.f32 %v644, %v756
      %v758 = vpop.f32.mrf.mxu0
      %759 = vmatprep.mubr.bf16.mxu0 0
      %760 = vmatmul.mubr.bf16.gmra.mxu0 %v545
      %v761 = vpop.f32.mrf.mxu0
      %v762 = vadd.f32 %v649, %v761
      %v763 = vpop.f32.mrf.mxu0
      %v764 = vpop.f32.mrf.mxu0
      %v765 = vadd.f32 %v652, %v764
      %v766 = vpop.f32.mrf.mxu0
      %767 = vmatprep.mubr.bf16.mxu0 0
      %768 = vmatmul.mubr.bf16.gmra.mxu0 %v548
      %v769 = vpop.f32.mrf.mxu0
      %v770 = vadd.f32 %v657, %v769
      %v771 = vpop.f32.mrf.mxu0
      %v772 = vpop.f32.mrf.mxu0
      %v773 = vadd.f32 %v660, %v772
      %v774 = vpop.f32.mrf.mxu0
      %775 = vdwg.mxu0
      %v776 = vpack.c.bf16 %v701, %v698
      %v777 = vpack.c.bf16 %v709, %v706
      %v778 = vpack.c.bf16 %v717, %v714
      %v779 = vpack.c.bf16 %v725, %v722
      %v780 = vpack.c.bf16 %v733, %v730
      %v781 = vpack.c.bf16 %v741, %v738
      %v782 = vpack.c.bf16 %v749, %v746
      %v783 = vpack.c.bf16 %v757, %v754
      %v784 = vpack.c.bf16 %v765, %v762
      %v785 = vpack.c.bf16 %v773, %v770
      %v796 = vunpack.c.l.b16 %v776
      %v797 = vunpack.c.h.b16 %v776
      %v798 = vunpack.c.l.b16 %v777
      %v799 = vunpack.c.h.b16 %v777
      %v800 = vunpack.c.l.b16 %v778
      %v801 = vunpack.c.h.b16 %v778
      %v802 = vunpack.c.l.b16 %v779
      %v803 = vunpack.c.h.b16 %v779
      %v804 = vunpack.c.l.b16 %v780
      %v805 = vunpack.c.h.b16 %v780
      %v806 = vunpack.c.l.b16 %v781
      %v807 = vunpack.c.h.b16 %v781
      %v808 = vunpack.c.l.b16 %v782
      %v809 = vunpack.c.h.b16 %v782
      %v810 = vunpack.c.l.b16 %v783
      %v811 = vunpack.c.h.b16 %v783
      %v812 = vunpack.c.l.b16 %v784
      %v813 = vunpack.c.h.b16 %v784
      %v814 = vunpack.c.l.b16 %v785
      %v815 = vunpack.c.h.b16 %v785
      %v816 = vpack.c.b16 %v796, %v796
      %v817 = vpack.c.b16 %v797, %v797
      %v818 = vpack.c.b16 %v798, %v798
      %v819 = vpack.c.b16 %v799, %v799
      %v820 = vpack.c.b16 %v800, %v800
      %v821 = vpack.c.b16 %v801, %v801
      %v822 = vpack.c.b16 %v802, %v802
      %v823 = vpack.c.b16 %v803, %v803
      %v824 = vpack.c.b16 %v804, %v804
      %v825 = vpack.c.b16 %v805, %v805
      %v826 = vpack.c.b16 %v806, %v806
      %v827 = vpack.c.b16 %v807, %v807
      %v828 = vpack.c.b16 %v808, %v808
      %v829 = vpack.c.b16 %v809, %v809
      %v830 = vpack.c.b16 %v810, %v810
      %v831 = vpack.c.b16 %v811, %v811
      %v832 = vpack.c.b16 %v812, %v812
      %v833 = vpack.c.b16 %v813, %v813
      %v834 = vpack.c.b16 %v814, %v814
      %v835 = vpack.c.b16 %v815, %v815
      %vm856 = vcmask 257024
      %857 = vst.msk [vmem:[%s175] sm:$0xf] %vm856, %v816
      %858 = vst.msk [vmem:[%s175 + $0x4] sm:$0xf] %vm856, %v817
      %859 = vst.msk [vmem:[%s175 + $0x8] sm:$0xf] %vm856, %v818
      %860 = vst.msk [vmem:[%s175 + $0xc] sm:$0xf] %vm856, %v819
      %861 = vst.msk [vmem:[%s175 + $0x10] sm:$0xf] %vm856, %v820
      %862 = vst.msk [vmem:[%s175 + $0x14] sm:$0xf] %vm856, %v821
      %863 = vst.msk [vmem:[%s175 + $0x18] sm:$0xf] %vm856, %v822
      %864 = vst.msk [vmem:[%s175 + $0x1c] sm:$0xf] %vm856, %v823
      %865 = vst.msk [vmem:[%s175 + $0x20] sm:$0xf] %vm856, %v824
      %866 = vst.msk [vmem:[%s175 + $0x24] sm:$0xf] %vm856, %v825
      %867 = vst.msk [vmem:[%s175 + $0x28] sm:$0xf] %vm856, %v826
      %868 = vst.msk [vmem:[%s175 + $0x2c] sm:$0xf] %vm856, %v827
      %869 = vst.msk [vmem:[%s175 + $0x30] sm:$0xf] %vm856, %v828
      %870 = vst.msk [vmem:[%s175 + $0x34] sm:$0xf] %vm856, %v829
      %871 = vst.msk [vmem:[%s175 + $0x38] sm:$0xf] %vm856, %v830
      %872 = vst.msk [vmem:[%s175 + $0x3c] sm:$0xf] %vm856, %v831
      %873 = vst.msk [vmem:[%s175 + $0x40] sm:$0xf] %vm856, %v832
      %874 = vst.msk [vmem:[%s175 + $0x44] sm:$0xf] %vm856, %v833
      %875 = vst.msk [vmem:[%s175 + $0x48] sm:$0xf] %vm856, %v834
      %876 = vst.msk [vmem:[%s175 + $0x4c] sm:$0xf] %vm856, %v835
      %s877 = smul.u32 20, %s14
      %p878 = scmp.lt.s32.totalorder %s877, 39
      %s879 = scalar_select %p878, %s877, 39
      %s880 = smul.addr %s879, 4
      %s881 = scalar_lea.vmem %s3, %s880
      // Predicated region
      $region33: #{aggregation_forward.4} parent=31 // pred_check
        %p882 = pneg %p100
      $region34: #{aggregation_forward.4} parent=31 // pred_check_branch
        %884 = sbr.rel (%p882) target = $region36
      $region35: #{aggregation_forward.4} parent=31 // pred_region
        %s885 = smul.u32 20, %s14
      $region36: #{aggregation_forward.4} parent=31 // pred_fallthru
        _
    $region32: #{aggregation_forward.4} parent=5 // pred_fallthru
      _
    %p886 = scmp.le.s32.totalorder 2, %s9
    // Predicated region
    $region37: #{aggregation_forward.4} parent=5 // pred_check
      %p887 = pneg %p886
    $region38: #{aggregation_forward.4} parent=5 // pred_check_branch
      %889 = sbr.rel (%p887) target = $region40
    $region39: #{aggregation_forward.4} parent=5 // pred_region
      %s890 = ssub.s32 %s9, 2
      // Predicated region
      $region41: #{aggregation_forward.4} parent=39 // pred_check
        %p891 = pneg %p106
      $region42: #{aggregation_forward.4} parent=39 // pred_check_branch
        %893 = sbr.rel (%p891) target = $region44
      $region43: #{aggregation_forward.4} parent=39 // pred_region
        %s894 = smul.u32 20, %s15
        %p895 = scmp.lt.s32.totalorder %s894, 39
        %s896 = scalar_select %p895, %s894, 39
        %s897 = smul.addr %s896, 4
        %s898 = scalar_lea.vmem %s3, %s897
      $region44: #{aggregation_forward.4} parent=39 // pred_fallthru
        _
    $region40: #{aggregation_forward.4} parent=5 // pred_fallthru
      _
  $region6: #{aggregation_forward.4} parent=0 // loop_footer
    %s13 = sadd.s32 1, %s9
  $region7: #{aggregation_forward.4} parent=0 // loop_footer_branch
    %8 = sbr.rel target = $region3
  $region8: #{aggregation_forward.4} parent=0 // loop_exit
    _

// kernel: aggregation_forward.5
$region0: #{aggregation_forward.5}
  #allocation0 [shape = 'u32[]', space=smem, size = 0x4, offset = 0x4, fixed_abs, tag = 'smem constant byte address 0x4 - core index']
  #allocation1 [shape = 'u32[144,128]{1,0:T(1,128)}', space=vmem, size = 0x12000, scoped, tag = 'internal scratch']
  %s0 = inlined_call_operand.vmem [shape: bf16[80,64], index: 0, kind: input, shape index: {}]
  %s1 = inlined_call_operand.vmem [shape: bf16[64,16], index: 1, kind: input, shape index: {}]
  %s2 = inlined_call_operand.vmem [shape: f32[1,16], index: 2, kind: input, shape index: {}]
  %s3 = inlined_call_operand.vmem [shape: bf16[80,16], index: 3, kind: output, shape index: {}]
  %s4 = sld [smem:[#allocation0]]
  $region89: #{aggregation_forward.5} parent=0
    _
  %s6 = ssub.s32 1, %s4
  %s7 = scalar_select 0, %s6, %s4
  $region1: #{aggregation_forward.5} parent=0
    #allocation2 [shape = 'u8[24576]{0}', space=vmem, size = 0x6000, scoped, tag = 'output window, operand 0']
    loop: start=0, step=1, limit=4
    $region2: #{aggregation_forward.5} parent=1 // loop_pre_header
      _
    $region3: #{aggregation_forward.5} parent=1 // loop_header
      %s9 = sphi 0, %s13
      %p10 = scmp.ge.s32.totalorder %s9, 4
      %s19 = sphi 0, %s21
      %s22 = sphi 0, %s19
      %s23 = sphi 0, %s22
      %s39 = sphi 0, %s23
      %s43 = sphi 0, %s43
      %s45 = sphi 0, %s43
      %s46 = sphi 0, %s45
      %s60 = sphi 0, %s46
      %s64 = sphi 0, %s64
      %s66 = sphi 0, %s64
      %s67 = sphi 0, %s66
      %s81 = sphi 0, %s67
      %s87 = sphi 0, %s89
      %s90 = sphi 0, %s87
      %s91 = sphi 0, %s90
      %s107 = sphi 0, %s91
    $region4: #{aggregation_forward.5} parent=1 // loop_header_branch
      %12 = sbr.rel (%p10) target = $region8
    $region5: #{aggregation_forward.5} parent=1 // loop_body
      %s14 = ssub.s32 %s9, 1
      %s15 = ssub.s32 %s9, 2
      %s16 = sadd.s32 %s9, 1
      %s17 = ssub.s32 %s9, %s16
      %p18 = scmp.eq.s32.totalorder %s17, 0
      %s20 = sadd.s32 %s19, 1
      %s21 = scalar_select %p18, %s19, %s20
      %p24 = pneg %p18
      %p25 = scmp.eq.s32.totalorder %s9, 1
      %p26 = por %p24, %p25
      %p27 = scmp.ne.s32.totalorder %s19, %s22
      %p28 = scmp.eq.s32.totalorder %s9, 0
      %p29 = por %p27, %p28
      %p30 = scmp.ne.s32.totalorder %s19, %s22
      %p31 = scmp.eq.s32.totalorder %s14, 1
      %p32 = por %p30, %p31
      %p33 = scmp.ne.s32.totalorder %s22, %s23
      %p34 = scmp.eq.s32.totalorder %s14, 0
      %p35 = por %p33, %p34
      %p36 = scmp.ne.s32.totalorder %s22, %s23
      %p37 = scmp.eq.s32.totalorder %s15, 1
      %p38 = por %p36, %p37
      %p40 = scmp.ne.s32.totalorder %s23, %s39
      %p41 = scmp.eq.s32.totalorder %s15, 0
      %p42 = por %p40, %p41
      %s44 = sadd.s32 %s43, 1
      %p47 = scmp.eq.s32.totalorder %s9, 1
      %p48 = scmp.ne.s32.totalorder %s43, %s45
      %p49 = scmp.eq.s32.totalorder %s9, 0
      %p50 = por %p48, %p49
      %p51 = scmp.ne.s32.totalorder %s43, %s45
      %p52 = scmp.eq.s32.totalorder %s14, 1
      %p53 = por %p51, %p52
      %p54 = scmp.ne.s32.totalorder %s45, %s46
      %p55 = scmp.eq.s32.totalorder %s14, 0
      %p56 = por %p54, %p55
      %p57 = scmp.ne.s32.totalorder %s45, %s46
      %p58 = scmp.eq.s32.totalorder %s15, 1
      %p59 = por %p57, %p58
      %p61 = scmp.ne.s32.totalorder %s46, %s60
      %p62 = scmp.eq.s32.totalorder %s15, 0
      %p63 = por %p61, %p62
      %s65 = sadd.s32 %s64, 1
      %p68 = scmp.eq.s32.totalorder %s9, 1
      %p69 = scmp.ne.s32.totalorder %s64, %s66
      %p70 = scmp.eq.s32.totalorder %s9, 0
      %p71 = por %p69, %p70
      %p72 = scmp.ne.s32.totalorder %s64, %s66
      %p73 = scmp.eq.s32.totalorder %s14, 1
      %p74 = por %p72, %p73
      %p75 = scmp.ne.s32.totalorder %s66, %s67
      %p76 = scmp.eq.s32.totalorder %s14, 0
      %p77 = por %p75, %p76
      %p78 = scmp.ne.s32.totalorder %s66, %s67
      %p79 = scmp.eq.s32.totalorder %s15, 1
      %p80 = por %p78, %p79
      %p82 = scmp.ne.s32.totalorder %s67, %s81
      %p83 = scmp.eq.s32.totalorder %s15, 0
      %p84 = por %p82, %p83
      %s85 = ssub.s32 %s9, %s16
      %p86 = scmp.eq.s32.totalorder %s85, 0
      %s88 = sadd.s32 %s87, 1
      %s89 = scalar_select %p86, %s87, %s88
      %p92 = pneg %p86
      %p93 = scmp.eq.s32.totalorder %s9, 1
      %p94 = por %p92, %p93
      %p95 = scmp.ne.s32.totalorder %s87, %s90
      %p96 = scmp.eq.s32.totalorder %s9, 0
      %p97 = por %p95, %p96
      %p98 = scmp.ne.s32.totalorder %s87, %s90
      %p99 = scmp.eq.s32.totalorder %s14, 1
      %p100 = por %p98, %p99
      %p101 = scmp.ne.s32.totalorder %s90, %s91
      %p102 = scmp.eq.s32.totalorder %s14, 0
      %p103 = por %p101, %p102
      %p104 = scmp.ne.s32.totalorder %s90, %s91
      %p105 = scmp.eq.s32.totalorder %s15, 1
      %p106 = por %p104, %p105
      %p108 = scmp.ne.s32.totalorder %s91, %s107
      %p109 = scmp.eq.s32.totalorder %s15, 0
      %p110 = por %p108, %p109
      %p111 = scmp.le.s32.totalorder 1, %s9
      %p112 = scmp.lt.s32.totalorder %s9, 3
      %p113 = pnand %p111, %p112
      %p114 = pneg %p113
      // Predicated region
      $region9: #{aggregation_forward.5} parent=5 // pred_check
        _
      $region10: #{aggregation_forward.5} parent=5 // pred_check_branch
        %116 = sbr.rel (%p113) target = $region12
      $region11: #{aggregation_forward.5} parent=5 // pred_region
        %s117 = ssub.s32 %s9, 1
        // Predicated region
        $region13: #{aggregation_forward.5} parent=11 // pred_check
          %p118 = pneg %p56
        $region14: #{aggregation_forward.5} parent=11 // pred_check_branch
          %120 = sbr.rel (%p118) target = $region16
        $region15: #{aggregation_forward.5} parent=11 // pred_region
          _
        $region16: #{aggregation_forward.5} parent=11 // pred_fallthru
          _
        // Predicated region
        $region17: #{aggregation_forward.5} parent=11 // pred_check
          %p121 = pneg %p77
        $region18: #{aggregation_forward.5} parent=11 // pred_check_branch
          %123 = sbr.rel (%p121) target = $region20
        $region19: #{aggregation_forward.5} parent=11 // pred_region
          _
        $region20: #{aggregation_forward.5} parent=11 // pred_fallthru
          _
      $region12: #{aggregation_forward.5} parent=5 // pred_fallthru
        _
      %p124 = scmp.lt.s32.totalorder %s9, 2
      // Predicated region
      $region21: #{aggregation_forward.5} parent=5 // pred_check
        %p125 = pneg %p124
      $region22: #{aggregation_forward.5} parent=5 // pred_check_branch
        %127 = sbr.rel (%p125) target = $region24
      $region23: #{aggregation_forward.5} parent=5 // pred_region
        // Predicated region
        $region25: #{aggregation_forward.5} parent=23 // pred_check
          %p128 = pneg %p29
        $region26: #{aggregation_forward.5} parent=23 // pred_check_branch
          %130 = sbr.rel (%p128) target = $region28
        $region27: #{aggregation_forward.5} parent=23 // pred_region
          %s131 = smul.u32 6, %s9
          %s132 = ssub.s32 10, %s131
          %p133 = scmp.lt.s32.totalorder %s132, 6
          %s134 = scalar_select %p133, %s132, 6
          %s135 = smul.u32 64, %s134
          %p136 = scmp.lt.s32.totalorder %s131, 9
          %s137 = scalar_select %p136, %s131, 9
          %s138 = smul.addr %s137, 4
          %s139 = scalar_lea.vmem %s0, %s138
          %s140 = smul.u32 6, %s9
          %s141 = ssub.s32 10, %s140
          %p142 = scmp.lt.s32.totalorder %s141, 6
          %s143 = scalar_select %p142, %s141, 6
          %s144 = smul.u32 64, %s143
        $region28: #{aggregation_forward.5} parent=23 // pred_fallthru
          _
      $region24: #{aggregation_forward.5} parent=5 // pred_fallthru
        _
      %p145 = scmp.le.s32.totalorder 1, %s9
      %p146 = scmp.lt.s32.totalorder %s9, 3
      %p147 = pnand %p145, %p146
      %p148 = pneg %p147
      // Predicated region
      $region29: #{aggregation_forward.5} parent=5 // pred_check
        _
      $region30: #{aggregation_forward.5} parent=5 // pred_check_branch
        %150 = sbr.rel (%p147) target = $region32
      $region31: #{aggregation_forward.5} parent=5 // pred_region
        %s151 = ssub.s32 %s9, 1
        %s152 = smul.u32 6, %s14
        %s153 = ssub.s32 10, %s152
        %p154 = scmp.lt.s32.totalorder %s153, 6
        %s155 = scalar_select %p154, %s153, 6
        %s156 = smul.u32 64, %s155
        %p157 = scmp.lt.s32.totalorder %s152, 9
        %s158 = scalar_select %p157, %s152, 9
        %s159 = smul.addr %s158, 4
        %s160 = scalar_lea.vmem %s0, %s159
        %p161 = pneg %p35
        %p162 = pneg %p32
        %p163 = pneg %p56
        %p164 = pneg %p53
        %p165 = pneg %p77
        %p166 = pneg %p74
        %p167 = pneg %p103
        %p168 = pneg %p100
        %s169 = sand.u32 %s90, 1
        %s170 = sand.u32 %s90, 1
        %s171 = smul.addr %s170, 24
        %s172 = scalar_lea.vmem [#allocation2], %s171
        %s173 = smul.u32 6, %s14
        %s174 = ssub.s32 10, %s173
        %p175 = scmp.lt.s32.totalorder %s174, 6
        %s176 = scalar_select %p175, %s174, 6
        %s177 = smul.u32 64, %s176
        %p178 = scmp.lt.s32.totalorder %s173, 9
        %s179 = scalar_select %p178, %s173, 9
        %s180 = smul.addr %s179, 4
        %s181 = scalar_lea.vmem %s0, %s180
        %s182 = smul.u32 6, %s14
        %s183 = ssub.s32 10, %s182
        %p184 = scmp.lt.s32.totalorder %s183, 6
        %s185 = scalar_select %p184, %s183, 6
        %s186 = smul.u32 64, %s185
        %s187 = smul.u32 6, %s14
        %s188 = ssub.s32 10, %s187
        %p189 = scmp.lt.s32.totalorder %s188, 6
        %s190 = scalar_select %p189, %s188, 6
        %s191 = smul.u32 64, %s190
        %v193 = vld [vmem:[%s181] sm:$0xf]
        %v194 = vld [vmem:[%s181 + $0x4] sm:$0xf]
        %v195 = vld [vmem:[%s181 + $0x8] sm:$0xf]
        %v196 = vld [vmem:[%s181 + $0xc] sm:$0xf]
        %v197 = vld [vmem:[%s181 + $0x10] sm:$0xf]
        %v198 = vld [vmem:[%s181 + $0x14] sm:$0xf]
        %v199 = vld [vmem:[%s1] sm:$0xf]
        %v200 = vld [vmem:[%s1 + $0x4] sm:$0xf]
        %v201 = vld [vmem:[%s1 + $0x8] sm:$0xf]
        %v202 = vld [vmem:[%s1 + $0xc] sm:$0xf]
        %v203 = vld [vmem:[%s1 + $0x10] sm:$0xf]
        %v204 = vld [vmem:[%s1 + $0x14] sm:$0xf]
        %v205 = vld [vmem:[%s1 + $0x18] sm:$0xf]
        %v206 = vld [vmem:[%s1 + $0x1c] sm:$0xf]
        %v207 = vld [vmem:[%s2] sm:$0x1]
        %v209 = vlaneseq
        %v210 = vshrl.u32 %v209, 7
        %v211 = vsub.s32 0, %v210
        %v212 = vrot.slane %v207, %v211
        %v220 = vunpack.c.l.b16 %v193
        %v221 = vunpack.c.l.b16 %v194
        %v222 = vunpack.c.l.b16 %v195
        %v223 = vunpack.c.l.b16 %v196
        %v224 = vunpack.c.l.b16 %v197
        %v225 = vunpack.c.l.b16 %v198
        %v226 = vpack.c.b16 %v221, %v220
        %v227 = vpack.c.b16 %v223, %v222
        %v228 = vpack.c.b16 %v225, %v224
        %v237 = vunpack.c.l.b16 %v199
        %v238 = vunpack.c.l.b16 %v200
        %v239 = vunpack.c.l.b16 %v201
        %v240 = vunpack.c.l.b16 %v202
        %v241 = vunpack.c.l.b16 %v203
        %v242 = vunpack.c.l.b16 %v204
        %v243 = vunpack.c.l.b16 %v205
        %v244 = vunpack.c.l.b16 %v206
        %v245 = vpack.c.b16 %v238, %v237
        %v246 = vpack.c.b16 %v240, %v239
        %v247 = vpack.c.b16 %v242, %v241
        %v248 = vpack.c.b16 %v244, %v243
        %vm253 = vcmask 523264
        %v255 = vsel %vm253, %v226, 0
        %v258 = vsel %vm253, %v227, 0
        %v261 = vsel %vm253, %v228, 0
        %263 = vmatprep.subr.bf16.mxu0 0
        %264 = vmatpush1.bf16.msra.mxu0 0
        %265 = vmatprep.subr.bf16.mxu0 0
        %266 = vmatpush1.bf16.msra.mxu0 0
        %267 = vmatprep.subr.bf16.mxu0 0
        %268 = vmatpush1.bf16.msra.mxu0 0
        %269 = vmatprep.subr.bf16.mxu0 0
        %270 = vmatpush1.bf16.msra.mxu0 0
        %271 = vmatprep.subr.bf16.mxu0 0
        %272 = vmatpush1.bf16.msra.mxu0 %v248
        %273 = vmatprep.subr.bf16.mxu0 0
        %274 = vmatpush1.bf16.msra.mxu0 %v247
        %275 = vmatprep.subr.bf16.mxu0 0
        %276 = vmatpush1.bf16.msra.mxu0 %v246
        %277 = vmatprep.subr.bf16.mxu0 0
        %278 = vmatpush1.bf16.msra.mxu0 %v245
        %279 = vmatprep.subr.bf16.mxu0 0
        %280 = vmatpush2.bf16.msra.mxu0 0
        %281 = vmatprep.subr.bf16.mxu0 0
        %282 = vmatpush2.bf16.msra.mxu0 0
        %283 = vmatprep.subr.bf16.mxu0 0
        %284 = vmatpush2.bf16.msra.mxu0 0
        %285 = vmatprep.subr.bf16.mxu0 0
        %286 = vmatpush2.bf16.msra.mxu0 0
        %287 = vmatprep.subr.bf16.mxu0 0
        %288 = vmatpush2.bf16.msra.mxu0 0
        %289 = vmatprep.subr.bf16.mxu0 0
        %290 = vmatpush2.bf16.msra.mxu0 0
        %291 = vmatprep.subr.bf16.mxu0 0
        %292 = vmatpush2.bf16.msra.mxu0 0
        %293 = vmatprep.subr.bf16.mxu0 0
        %294 = vmatpush2.bf16.msra.mxu0 0
        %295 = vmatprep.mubr.bf16.mxu0 0
        %296 = vmatmul.mubr.bf16.gmra.mxu0 %v255
        %v297 = vpop.f32.mrf.mxu0
        %v298 = vadd.f32 %v212, %v297
        %v299 = vpop.f32.mrf.mxu0
        %v300 = vpop.f32.mrf.mxu0
        %v301 = vadd.f32 %v212, %v300
        %v302 = vpop.f32.mrf.mxu0
        %303 = vmatprep.mubr.bf16.mxu0 0
        %304 = vmatmul.mubr.bf16.gmra.mxu0 %v258
        %v305 = vpop.f32.mrf.mxu0
        %v306 = vadd.f32 %v212, %v305
        %v307 = vpop.f32.mrf.mxu0
        %v308 = vpop.f32.mrf.mxu0
        %v309 = vadd.f32 %v212, %v308
        %v310 = vpop.f32.mrf.mxu0
        %311 = vmatprep.mubr.bf16.mxu0 0
        %312 = vmatmul.mubr.bf16.gmra.mxu0 %v261
        %v313 = vpop.f32.mrf.mxu0
        %v314 = vadd.f32 %v212, %v313
        %v315 = vpop.f32.mrf.mxu0
        %v316 = vpop.f32.mrf.mxu0
        %v317 = vadd.f32 %v212, %v316
        %v318 = vpop.f32.mrf.mxu0
        %319 = vdwg.mxu0
        %v320 = vpack.c.bf16 %v301, %v298
        %v321 = vpack.c.bf16 %v309, %v306
        %v322 = vpack.c.bf16 %v317, %v314
        %v326 = vunpack.c.l.b16 %v320
        %v327 = vunpack.c.h.b16 %v320
        %v328 = vunpack.c.l.b16 %v321
        %v329 = vunpack.c.h.b16 %v321
        %v330 = vunpack.c.l.b16 %v322
        %v331 = vunpack.c.h.b16 %v322
        %v332 = vpack.c.b16 %v326, %v326
        %v333 = vpack.c.b16 %v327, %v327
        %v334 = vpack.c.b16 %v328, %v328
        %v335 = vpack.c.b16 %v329, %v329
        %v336 = vpack.c.b16 %v330, %v330
        %v337 = vpack.c.b16 %v331, %v331
        %vm344 = vcmask 125952
        %345 = vst.msk [vmem:[%s172] sm:$0xf] %vm344, %v332
        %346 = vst.msk [vmem:[%s172 + $0x4] sm:$0xf] %vm344, %v333
        %347 = vst.msk [vmem:[%s172 + $0x8] sm:$0xf] %vm344, %v334
        %348 = vst.msk [vmem:[%s172 + $0xc] sm:$0xf] %vm344, %v335
        %349 = vst.msk [vmem:[%s172 + $0x10] sm:$0xf] %vm344, %v336
        %350 = vst.msk [vmem:[%s172 + $0x14] sm:$0xf] %vm344, %v337
        %s351 = sand.u32 %s90, 1
        %s352 = sand.u32 %s90, 1
        %s353 = smul.addr %s352, 24
        %s354 = scalar_lea.vmem [#allocation2], %s353
        // Predicated region
        $region33: #{aggregation_forward.5} parent=31 // pred_check
          %p355 = pneg %p100
        $region34: #{aggregation_forward.5} parent=31 // pred_check_branch
          %357 = sbr.rel (%p355) target = $region36
        $region35: #{aggregation_forward.5} parent=31 // pred_region
          %s358 = smul.u32 6, %s14
          %s359 = ssub.s32 10, %s358
          %p360 = scmp.lt.s32.totalorder %s359, 6
          %s361 = scalar_select %p360, %s359, 6
          %s362 = smul.u32 64, %s361
          %p363 = scmp.ne.s32.totalorder 0, %s362
          %s364 = smul.addr %s358, 4
          %s365 = scalar_lea.vmem %s3, %s364
          // Predicated region
          $region37: #{aggregation_forward.5} parent=35 // pred_check
            %p366 = pneg %p363
          $region38: #{aggregation_forward.5} parent=35 // pred_check_branch
            %368 = sbr.rel (%p366) target = $region40
          $region39: #{aggregation_forward.5} parent=35 // pred_region
            // Predicated region
            $region41: #{aggregation_forward.5} parent=39 // pred_check
              _
            $region42: #{aggregation_forward.5} parent=39 // pred_check_branch
              %370 = sbr.rel target = $region44
            $region43: #{aggregation_forward.5} parent=39 // pred_region
              // Predicated region
              $region63: #{aggregation_forward.5} parent=43 // pred_check
                _
              $region64: #{aggregation_forward.5} parent=43 // pred_check_branch
                %431 = sbr.rel (0) target = $region66
              $region65: #{aggregation_forward.5} parent=43 // pred_region
                %s433 = ssub.s32 16, 1
                %s434 = sdiv.u32.pop %s361, 6
                %s435 = srem.u32.pop %s361, 6
                // While loop
                $region67: #{aggregation_forward.5} parent=65 // loop_pre_header
                  _
                $region68: #{aggregation_forward.5} parent=65 // loop_header
                  %s437 = sphi 0, %s439
                  %p438 = scmp.ge.s32.totalorder %s437, %s434
                  %s442 = sphi 0, %s459
                  %s443 = sphi %s354, %s462
                  %s444 = sphi %s365, %s463
                $region69: #{aggregation_forward.5} parent=65 // loop_header_branch
                  %441 = sbr.rel (%p438) target = $region73
                $region70: #{aggregation_forward.5} parent=65 // loop_body
                  %v445 = vld [vmem:[%s443] sm:%s433]
                  %446 = vst [vmem:[%s444] sm:%s433] %v445
                  %v447 = vld [vmem:[%s443 + $0x4] sm:%s433]
                  %448 = vst [vmem:[%s444 + $0x4] sm:%s433] %v447
                  %v449 = vld [vmem:[%s443 + $0x8] sm:%s433]
                  %450 = vst [vmem:[%s444 + $0x8] sm:%s433] %v449
                  %v451 = vld [vmem:[%s443 + $0xc] sm:%s433]
                  %452 = vst [vmem:[%s444 + $0xc] sm:%s433] %v451
                  %v453 = vld [vmem:[%s443 + $0x10] sm:%s433]
                  %454 = vst [vmem:[%s444 + $0x10] sm:%s433] %v453
                  %v455 = vld [vmem:[%s443 + $0x14] sm:%s433]
                  %456 = vst [vmem:[%s444 + $0x14] sm:%s433] %v455
                  %s457 = sadd.s32 1, %s442
                  %p458 = scmp.ge.s32.totalorder %s457, %s434
                  %s459 = scalar_select %p458, 0, %s457
                  %s460 = smul.u32 %s459, 24
                  %s461 = smul.u32 %s459, 24
                  %s462 = scalar_lea.vmem %s354, %s460 [#allocation2]
                  %s463 = scalar_lea.vmem %s365, %s461
                $region71: #{aggregation_forward.5} parent=65 // loop_footer
                  %s439 = sadd.s32 %s437, 1
                $region72: #{aggregation_forward.5} parent=65 // loop_footer_branch
                  %436 = sbr.rel target = $region68
                $region73: #{aggregation_forward.5} parent=65 // loop_exit
                  _
                %s464 = sdiv.u32.pop %s361, 6
                %s465 = srem.u32.pop %s361, 6
                %s466 = smul.u32 %s464, 6
                %s467 = smul.u32 4, %s466
                %s468 = scalar_lea.vmem %s354, %s467 [#allocation2]
                %s469 = smul.u32 4, %s466
                %s470 = scalar_lea.vmem %s365, %s469
                // While loop
                $region74: #{aggregation_forward.5} parent=65 // loop_pre_header
                  _
                $region75: #{aggregation_forward.5} parent=65 // loop_header
                  %s472 = sphi 0, %s474
                  %p473 = scmp.ge.s32.totalorder %s472, %s465
                  %s477 = sphi 0, %s484
                  %s478 = sphi %s468, %s487
                  %s479 = sphi %s470, %s488
                $region76: #{aggregation_forward.5} parent=65 // loop_header_branch
                  %476 = sbr.rel (%p473) target = $region80
                $region77: #{aggregation_forward.5} parent=65 // loop_body
                  %v480 = vld [vmem:[%s478] sm:%s433]
                  %481 = vst [vmem:[%s479] sm:%s433] %v480
                  %s482 = sadd.s32 1, %s477
                  %p483 = scmp.ge.s32.totalorder %s482, %s465
                  %s484 = scalar_select %p483, 0, %s482
                  %s485 = smul.u32 %s484, 4
                  %s486 = smul.u32 %s484, 4
                  %s487 = scalar_lea.vmem %s468, %s485 [#allocation2]
                  %s488 = scalar_lea.vmem %s470, %s486
                $region78: #{aggregation_forward.5} parent=65 // loop_footer
                  %s474 = sadd.s32 %s472, 1
                $region79: #{aggregation_forward.5} parent=65 // loop_footer_branch
                  %471 = sbr.rel target = $region75
                $region80: #{aggregation_forward.5} parent=65 // loop_exit
                  _
              $region66: #{aggregation_forward.5} parent=43 // pred_fallthru
                _
            $region44: #{aggregation_forward.5} parent=39 // pred_fallthru
              _
            // Predicated region
            $region45: #{aggregation_forward.5} parent=39 // pred_check
              _
            $region46: #{aggregation_forward.5} parent=39 // pred_check_branch
              %372 = sbr.rel (0) target = $region48
            $region47: #{aggregation_forward.5} parent=39 // pred_region
              %s374 = ssub.s32 16, 1
              %s375 = sdiv.u32.pop %s361, 6
              %s376 = srem.u32.pop %s361, 6
              // While loop
              $region49: #{aggregation_forward.5} parent=47 // loop_pre_header
                _
              $region50: #{aggregation_forward.5} parent=47 // loop_header
                %s378 = sphi 0, %s380
                %p379 = scmp.ge.s32.totalorder %s378, %s375
                %s383 = sphi 0, %s400
                %s384 = sphi %s354, %s403
                %s385 = sphi %s365, %s404
              $region51: #{aggregation_forward.5} parent=47 // loop_header_branch
                %382 = sbr.rel (%p379) target = $region55
              $region52: #{aggregation_forward.5} parent=47 // loop_body
                %v386 = vld [vmem:[%s384] sm:%s374]
                %387 = vst [vmem:[%s385] sm:%s374] %v386
                %v388 = vld [vmem:[%s384 + $0x4] sm:%s374]
                %389 = vst [vmem:[%s385 + $0x4] sm:%s374] %v388
                %v390 = vld [vmem:[%s384 + $0x8] sm:%s374]
                %391 = vst [vmem:[%s385 + $0x8] sm:%s374] %v390
                %v392 = vld [vmem:[%s384 + $0xc] sm:%s374]
                %393 = vst [vmem:[%s385 + $0xc] sm:%s374] %v392
                %v394 = vld [vmem:[%s384 + $0x10] sm:%s374]
                %395 = vst [vmem:[%s385 + $0x10] sm:%s374] %v394
                %v396 = vld [vmem:[%s384 + $0x14] sm:%s374]
                %397 = vst [vmem:[%s385 + $0x14] sm:%s374] %v396
                %s398 = sadd.s32 1, %s383
                %p399 = scmp.ge.s32.totalorder %s398, %s375
                %s400 = scalar_select %p399, 0, %s398
                %s401 = smul.u32 %s400, 24
                %s402 = smul.u32 %s400, 24
                %s403 = scalar_lea.vmem %s354, %s401 [#allocation2]
                %s404 = scalar_lea.vmem %s365, %s402
              $region53: #{aggregation_forward.5} parent=47 // loop_footer
                %s380 = sadd.s32 %s378, 1
              $region54: #{aggregation_forward.5} parent=47 // loop_footer_branch
                %377 = sbr.rel target = $region50
              $region55: #{aggregation_forward.5} parent=47 // loop_exit
                _
              %s405 = sdiv.u32.pop %s361, 6
              %s406 = srem.u32.pop %s361, 6
              %s407 = smul.u32 %s405, 6
              %s408 = smul.u32 4, %s407
              %s409 = scalar_lea.vmem %s354, %s408 [#allocation2]
              %s410 = smul.u32 4, %s407
              %s411 = scalar_lea.vmem %s365, %s410
              // While loop
              $region56: #{aggregation_forward.5} parent=47 // loop_pre_header
                _
              $region57: #{aggregation_forward.5} parent=47 // loop_header
                %s413 = sphi 0, %s415
                %p414 = scmp.ge.s32.totalorder %s413, %s406
                %s418 = sphi 0, %s425
                %s419 = sphi %s409, %s428
                %s420 = sphi %s411, %s429
              $region58: #{aggregation_forward.5} parent=47 // loop_header_branch
                %417 = sbr.rel (%p414) target = $region62
              $region59: #{aggregation_forward.5} parent=47 // loop_body
                %v421 = vld [vmem:[%s419] sm:%s374]
                %422 = vst [vmem:[%s420] sm:%s374] %v421
                %s423 = sadd.s32 1, %s418
                %p424 = scmp.ge.s32.totalorder %s423, %s406
                %s425 = scalar_select %p424, 0, %s423
                %s426 = smul.u32 %s425, 4
                %s427 = smul.u32 %s425, 4
                %s428 = scalar_lea.vmem %s409, %s426 [#allocation2]
                %s429 = scalar_lea.vmem %s411, %s427
              $region60: #{aggregation_forward.5} parent=47 // loop_footer
                %s415 = sadd.s32 %s413, 1
              $region61: #{aggregation_forward.5} parent=47 // loop_footer_branch
                %412 = sbr.rel target = $region57
              $region62: #{aggregation_forward.5} parent=47 // loop_exit
                _
            $region48: #{aggregation_forward.5} parent=39 // pred_fallthru
              _
          $region40: #{aggregation_forward.5} parent=35 // pred_fallthru
            _
          %489 = vnop
        $region36: #{aggregation_forward.5} parent=31 // pred_fallthru
          _
      $region32: #{aggregation_forward.5} parent=5 // pred_fallthru
        _
      %p490 = scmp.le.s32.totalorder 2, %s9
      // Predicated region
      $region81: #{aggregation_forward.5} parent=5 // pred_check
        %p491 = pneg %p490
      $region82: #{aggregation_forward.5} parent=5 // pred_check_branch
        %493 = sbr.rel (%p491) target = $region84
      $region83: #{aggregation_forward.5} parent=5 // pred_region
        %s494 = ssub.s32 %s9, 2
        // Predicated region
        $region85: #{aggregation_forward.5} parent=83 // pred_check
          %p495 = pneg %p106
        $region86: #{aggregation_forward.5} parent=83 // pred_check_branch
          %497 = sbr.rel (%p495) target = $region88
        $region87: #{aggregation_forward.5} parent=83 // pred_region
          %s498 = sand.u32 %s91, 1
          %s499 = sand.u32 %s91, 1
          %s500 = smul.addr %s499, 24
          %s501 = scalar_lea.vmem [#allocation2], %s500
        $region88: #{aggregation_forward.5} parent=83 // pred_fallthru
          _
      $region84: #{aggregation_forward.5} parent=5 // pred_fallthru
        _
    $region6: #{aggregation_forward.5} parent=1 // loop_footer
      %s13 = sadd.s32 1, %s9
    $region7: #{aggregation_forward.5} parent=1 // loop_footer_branch
      %8 = sbr.rel target = $region3
    $region8: #{aggregation_forward.5} parent=1 // loop_exit
      _

</llo_original>
